<compile_context>
chip_gen: v5e
topology: v5e:2x2
jax: 0.10.0
libtpu: 0.0.40
codegen_flags: <defaults>
</compile_context>

<pallas_src>
import functools

import jax
import jax.numpy as jnp
from jax import lax
from jax.experimental import pallas as pl
from jax.experimental.pallas import tpu as pltpu

_BN_EPS = 1e-5


def _round_up(x, m):
    return (x + m - 1) // m * m


# ------------------------------ Fused kernel --------------------------------

def _convs_fused_kernel(x_ref, w1, b1, w2, b2, w3, b3, w4, b4, w5_ref, b5_ref,
                        o_ref, *, H, W, cin5):
    HW = H * W
    N = x_ref.shape[1]                          # Bblk * H * W lanes (whole images)

    lane = lax.broadcasted_iota(jnp.int32, (1, N), 1)
    col = lane % W                              # column within its image
    pix = lane % HW                             # pixel index within its image
    mask_l = (col != 0).astype(jnp.float32)     # kw=0 taps: zero at w == 0
    mask_r = (col != W - 1).astype(jnp.float32)  # kw=2 taps: zero at w == W-1
    mask_t = (pix >= W).astype(jnp.float32)     # kh=0 taps: zero at h == 0
    mask_b = (pix < HW - W).astype(jnp.float32)  # kh=2 taps: zero at h == H-1

    def roll_lanes(v, shift):
        shift = shift % v.shape[-1]             # static, non-negative
        return pltpu.roll(v, shift, axis=1) if shift else v

    def conv3x3_bn_relu(a, w_ref, b_ref):
        # a: (Cin_pad, N) f32  ->  (Cout_pad, N) f32
        a_l = roll_lanes(a, 1) * mask_l         # kw=0 : reads x[.., w-1]
        a_r = roll_lanes(a, -1) * mask_r        # kw=2 : reads x[.., w+1]
        mid = jnp.concatenate([a_l, a, a_r], axis=0)        # kh=1 row block
        top = roll_lanes(mid, W) * mask_t                    # kh=0 : row h-1
        bot = roll_lanes(mid, -W) * mask_b                   # kh=2 : row h+1
        patches = jnp.concatenate([top, mid, bot], axis=0)   # (9*Cin_pad, N)
        acc = jnp.dot(w_ref[...], patches.astype(jnp.bfloat16),
                      preferred_element_type=jnp.float32)    # one MXU matmul/layer
        return jnp.maximum(acc + b_ref[...], 0.0)            # f32 VPU epilogue

    a = x_ref[...].astype(jnp.float32)
    a = conv3x3_bn_relu(a, w1, b1)
    a = conv3x3_bn_relu(a, w2, b2)
    a = conv3x3_bn_relu(a, w3, b3)
    a = conv3x3_bn_relu(a, w4, b4)

    cout5 = o_ref.shape[0]
    if cin5 <= 8:
        # K is tiny (channel // 8): a few VPU broadcast-FMAs beat an MXU push.
        y = jnp.zeros((cout5, N), jnp.float32)
        for c in range(cin5):
            y = y + w5_ref[:, c:c + 1] * a[c:c + 1, :]
        y = y + b5_ref[...]
    else:
        y = jnp.dot(w5_ref[...].astype(jnp.bfloat16), a.astype(jnp.bfloat16),
                    preferred_element_type=jnp.float32) + b5_ref[...]
    o_ref[...] = y.astype(o_ref.dtype)


# --------------------------- Weight folding / packing ------------------------

def _fold_layer(layer, cin_pad):
    """Fold BN (inference) + conv bias; pack the 3x3 HWIO weight as ONE
    (Cout_pad, 9*Cin_pad) bf16 matrix matching the in-kernel patch order
    ((kh, kw, ci) row-major), with Cin/Cout zero-padded to the sublane tile."""
    scale = layer["gamma"] / jnp.sqrt(layer["var"] + _BN_EPS)
    bias = (layer["conv_b"] - layer["mean"]) * scale + layer["beta"]
    w = layer["w"]                                   # (3, 3, Cin, Cout) HWIO
    cin, cout = w.shape[2], w.shape[3]
    cout_pad = _round_up(cout, 8)
    wp = jnp.transpose(w, (3, 0, 1, 2)) * scale[:, None, None, None]  # (Cout,3,3,Cin)
    wp = jnp.pad(wp, ((0, cout_pad - cout), (0, 0), (0, 0), (0, cin_pad - cin)))
    wp = wp.reshape(cout_pad, 9 * cin_pad).astype(jnp.bfloat16)
    bias = jnp.pad(bias, (0, cout_pad - cout))[:, None].astype(jnp.float32)
    return wp, bias, cout_pad


# ------------------------------- Wrapper -------------------------------------

def _pick_bblk(B, HW):
    """Images per grid step: aim for >= 1024 lanes/step to amortize the fixed
    per-step cost, but keep >= 2 parallel grid steps when B >= 2 so both of
    v7x's TensorCores are busy (v5e/v6e have one TC; no-op there)."""
    target = max(1, -(-1024 // HW))                 # ceil(1024 / HW)
    bblk = min(B, target)
    while B % bblk:
        bblk -= 1
    if B >= 2 and B // bblk < 2:
        bblk = max(1, B // 2)
        while B % bblk:
            bblk -= 1
    return bblk


def convs_forward(params, x_nchw):
    """Full Convs forward.  Input/output are NCHW (PyTorch convention)."""
    B, C0, H, W = x_nchw.shape
    HW = H * W
    c0_pad = _round_up(C0, 8)

    packed = []
    cin_pad = c0_pad
    for layer in params["layers"]:
        wp, bias, cin_pad = _fold_layer(layer, cin_pad)
        packed.append((wp, bias))

    cin5, cout5 = params["w5"].shape
    w5 = jnp.zeros((cout5, cin_pad), jnp.float32).at[:, :cin5].set(
        jnp.transpose(params["w5"]))                 # (Cout5, Cin4_pad)
    b5 = params["b5"][:, None].astype(jnp.float32)   # (Cout5, 1)

    # Channels-leading with the batch folded into the lane axis: (C, B*H*W).
    xp = jnp.pad(x_nchw, ((0, 0), (0, c0_pad - C0), (0, 0), (0, 0)))
    x2d = jnp.transpose(xp, (1, 0, 2, 3)).reshape(c0_pad, B * HW)

    bblk = _pick_bblk(B, HW)
    nblk = bblk * HW

    args = [x2d]
    in_specs = [pl.BlockSpec((c0_pad, nblk), lambda b: (0, b))]
    for wp, bias in packed:
        args += [wp, bias]
        # NOTE(synk): weight index maps are constant; weights are stored bf16
        # so their double-buffered copies stay small vs v7x's 64 MiB VMEM.
        in_specs += [pl.BlockSpec(wp.shape, lambda b: (0, 0)),
                     pl.BlockSpec(bias.shape, lambda b: (0, 0))]
    args += [w5, b5]
    in_specs += [pl.BlockSpec(w5.shape, lambda b: (0, 0)),
                 pl.BlockSpec(b5.shape, lambda b: (0, 0))]

    out = pl.pallas_call(
        functools.partial(_convs_fused_kernel, H=H, W=W, cin5=cin5),
        out_shape=jax.ShapeDtypeStruct((cout5, B * HW), jnp.float32),
        grid=(B // bblk,),
        in_specs=in_specs,
        out_specs=pl.BlockSpec((cout5, nblk), lambda b: (0, b)),
        compiler_params=pltpu.CompilerParams(
            dimension_semantics=("parallel",)),
    )(*args)
    return jnp.transpose(out.reshape(cout5, B, H, W), (1, 0, 2, 3))


# --------------------------- Parameter building ------------------------------

def make_params(key, inplanes, channel, out_channel):
    """Deterministic synthetic parameters mirroring Convs.__init__ shapes."""
    dims = [(inplanes, channel), (channel, channel // 2),
            (channel // 2, channel // 4), (channel // 4, channel // 8)]
    params = {"layers": []}
    for i, (cin, cout) in enumerate(dims):
        ks = jax.random.split(jax.random.fold_in(key, i), 5)
        w = jax.random.normal(ks[0], (3, 3, cin, cout), jnp.float32) * 0.1
        conv_b = jax.random.normal(ks[1], (cout,), jnp.float32) * 0.1
        gamma = 1.0 + 0.1 * jax.random.normal(ks[2], (cout,), jnp.float32)
        beta = 0.1 * jax.random.normal(ks[3], (cout,), jnp.float32)
        run_mean = 0.05 * jax.random.normal(ks[4], (cout,), jnp.float32)
        run_var = jnp.ones((cout,), jnp.float32)
        params["layers"].append(dict(w=w, conv_b=conv_b, gamma=gamma,
                                     beta=beta, mean=run_mean, var=run_var))
    k5 = jax.random.fold_in(key, 100)
    params["w5"] = jax.random.normal(
        k5, (channel // 8, out_channel), jnp.float32) * 0.1
    params["b5"] = jax.random.normal(
        jax.random.fold_in(key, 101), (out_channel,), jnp.float32) * 0.1
    return params


# ---------------------------- Pure-JAX reference -----------------------------

def _ref_layer(x, w, conv_b, gamma, beta, mean, var):
    y = lax.conv_general_dilated(
        x, w, window_strides=(1, 1), padding=((1, 1), (1, 1)),
        dimension_numbers=("NHWC", "HWIO", "NHWC")) + conv_b
    y = (y - mean) / jnp.sqrt(var + _BN_EPS) * gamma + beta
    return jnp.maximum(y, 0.0)


def convs_ref(params, x_nchw):
    x = jnp.transpose(x_nchw, (0, 2, 3, 1))
    for l in params["layers"]:
        x = _ref_layer(x, l["w"], l["conv_b"], l["gamma"], l["beta"],
                       l["mean"], l["var"])
    x = jnp.einsum("bhwc,co->bhwo", x, params["w5"]) + params["b5"]
    return jnp.transpose(x, (0, 3, 1, 2))


# --------------------------------- Main ---------------------------------------

if __name__ == "__main__":
    key = jax.random.PRNGKey(0)
    B, inplanes, H, W = 2, 4, 16, 16
    channel, out_channel = 16, 4          # channel // 8 == 2

    kx, kp = jax.random.split(key)
    x = jax.random.normal(kx, (B, inplanes, H, W), jnp.float32)   # NCHW input
    params = make_params(kp, inplanes, channel, out_channel)

    out = jax.block_until_ready(convs_forward(params, x))
    ref = jax.block_until_ready(convs_ref(params, x))

    assert out.shape == (B, out_channel, H, W), out.shape
    # bf16 MXU inputs (per perf review) -> slightly loosened tolerance vs the
    # all-f32 reference; still catches any structural / indexing bug.
    assert jnp.allclose(out, ref, rtol=3e-2, atol=3e-2), (
        float(jnp.max(jnp.abs(out - ref))))
    print("KERNEL_OK")
</pallas_src>

<mosaic_0001>
module attributes {stable_mosaic.version = 11 : i64} {
  func.func @_convs_fused_kernel(%arg0: i32, %arg1: memref<8x256xf32, #tpu.memory_space<vmem>>, %arg2: memref<16x72xbf16, #tpu.memory_space<vmem>>, %arg3: memref<16x1xf32, #tpu.memory_space<vmem>>, %arg4: memref<8x144xbf16, #tpu.memory_space<vmem>>, %arg5: memref<8x1xf32, #tpu.memory_space<vmem>>, %arg6: memref<8x72xbf16, #tpu.memory_space<vmem>>, %arg7: memref<8x1xf32, #tpu.memory_space<vmem>>, %arg8: memref<8x72xbf16, #tpu.memory_space<vmem>>, %arg9: memref<8x1xf32, #tpu.memory_space<vmem>>, %arg10: memref<4x8xf32, #tpu.memory_space<vmem>>, %arg11: memref<4x1xf32, #tpu.memory_space<vmem>>, %arg12: memref<4x256xf32, #tpu.memory_space<vmem>>) attributes {dimension_semantics = [#tpu.dimension_semantics<parallel>], iteration_bounds = array<i64: 2>, scalar_prefetch = 0 : i64, scratch_operands = 0 : i64, tpu.core_type = #tpu.core_type<tc>, window_params = [{transform_indices = @transform_0, window_bounds = array<i64: 8, 256>}, {pipeline_mode = #tpu.pipeline_mode<synchronous>, transform_indices = @transform_1, window_bounds = array<i64: 16, 72>}, {pipeline_mode = #tpu.pipeline_mode<synchronous>, transform_indices = @transform_2, window_bounds = array<i64: 16, 1>}, {pipeline_mode = #tpu.pipeline_mode<synchronous>, transform_indices = @transform_3, window_bounds = array<i64: 8, 144>}, {pipeline_mode = #tpu.pipeline_mode<synchronous>, transform_indices = @transform_4, window_bounds = array<i64: 8, 1>}, {pipeline_mode = #tpu.pipeline_mode<synchronous>, transform_indices = @transform_5, window_bounds = array<i64: 8, 72>}, {pipeline_mode = #tpu.pipeline_mode<synchronous>, transform_indices = @transform_6, window_bounds = array<i64: 8, 1>}, {pipeline_mode = #tpu.pipeline_mode<synchronous>, transform_indices = @transform_7, window_bounds = array<i64: 8, 72>}, {pipeline_mode = #tpu.pipeline_mode<synchronous>, transform_indices = @transform_8, window_bounds = array<i64: 8, 1>}, {pipeline_mode = #tpu.pipeline_mode<synchronous>, transform_indices = @transform_9, window_bounds = array<i64: 4, 8>}, {pipeline_mode = #tpu.pipeline_mode<synchronous>, transform_indices = @transform_10, window_bounds = array<i64: 4, 1>}, {transform_indices = @transform_11, window_bounds = array<i64: 4, 256>}]} {
    %0 = tpu.iota {dimensions = array<i32: 1>} : vector<1x256xi32>
    %c16_i32 = arith.constant 16 : i32
    %c0_i32 = arith.constant 0 : i32
    %1 = arith.cmpi eq, %c16_i32, %c0_i32 : i32
    %c1_i32 = arith.constant 1 : i32
    %2 = arith.select %1, %c1_i32, %c16_i32 : i32
    %3 = vector.broadcast %2 : i32 to vector<1x256xi32>
    %4 = arith.remsi %0, %3 : vector<1x256xi32>
    %c0_i32_0 = arith.constant 0 : i32
    %5 = vector.broadcast %c0_i32_0 : i32 to vector<1x256xi32>
    %6 = arith.cmpi ne, %4, %5 : vector<1x256xi32>
    %c0_i32_1 = arith.constant 0 : i32
    %7 = vector.broadcast %c0_i32_1 : i32 to vector<1x256xi32>
    %8 = arith.cmpi slt, %4, %7 : vector<1x256xi32>
    %c0_i32_2 = arith.constant 0 : i32
    %9 = arith.cmpi slt, %2, %c0_i32_2 : i32
    %10 = vector.broadcast %9 : i1 to vector<1x256xi1>
    %11 = vector.broadcast %10 : vector<1x256xi1> to vector<1x256xi1>
    %12 = arith.xori %8, %11 : vector<1x256xi1>
    %13 = arith.andi %12, %6 : vector<1x256xi1>
    %14 = vector.broadcast %2 : i32 to vector<1x256xi32>
    %15 = arith.addi %4, %14 : vector<1x256xi32>
    %16 = arith.select %13, %15, %4 : vector<1x256xi1>, vector<1x256xi32>
    %c256_i32 = arith.constant 256 : i32
    %c0_i32_3 = arith.constant 0 : i32
    %17 = arith.cmpi eq, %c256_i32, %c0_i32_3 : i32
    %c1_i32_4 = arith.constant 1 : i32
    %18 = arith.select %17, %c1_i32_4, %c256_i32 : i32
    %19 = vector.broadcast %18 : i32 to vector<1x256xi32>
    %20 = arith.remsi %0, %19 : vector<1x256xi32>
    %c0_i32_5 = arith.constant 0 : i32
    %21 = vector.broadcast %c0_i32_5 : i32 to vector<1x256xi32>
    %22 = arith.cmpi ne, %20, %21 : vector<1x256xi32>
    %c0_i32_6 = arith.constant 0 : i32
    %23 = vector.broadcast %c0_i32_6 : i32 to vector<1x256xi32>
    %24 = arith.cmpi slt, %20, %23 : vector<1x256xi32>
    %c0_i32_7 = arith.constant 0 : i32
    %25 = arith.cmpi slt, %18, %c0_i32_7 : i32
    %26 = vector.broadcast %25 : i1 to vector<1x256xi1>
    %27 = vector.broadcast %26 : vector<1x256xi1> to vector<1x256xi1>
    %28 = arith.xori %24, %27 : vector<1x256xi1>
    %29 = arith.andi %28, %22 : vector<1x256xi1>
    %30 = vector.broadcast %18 : i32 to vector<1x256xi32>
    %31 = arith.addi %20, %30 : vector<1x256xi32>
    %32 = arith.select %29, %31, %20 : vector<1x256xi1>, vector<1x256xi32>
    %c0_i32_8 = arith.constant 0 : i32
    %33 = vector.broadcast %c0_i32_8 : i32 to vector<1x256xi32>
    %34 = arith.cmpi ne, %16, %33 : vector<1x256xi32>
    %35 = arith.extui %34 : vector<1x256xi1> to vector<1x256xi32>
    %36 = arith.sitofp %35 : vector<1x256xi32> to vector<1x256xf32>
    %c15_i32 = arith.constant 15 : i32
    %37 = vector.broadcast %c15_i32 : i32 to vector<1x256xi32>
    %38 = arith.cmpi ne, %16, %37 : vector<1x256xi32>
    %39 = arith.extui %38 : vector<1x256xi1> to vector<1x256xi32>
    %40 = arith.sitofp %39 : vector<1x256xi32> to vector<1x256xf32>
    %c16_i32_9 = arith.constant 16 : i32
    %41 = vector.broadcast %c16_i32_9 : i32 to vector<1x256xi32>
    %42 = arith.cmpi sge, %32, %41 : vector<1x256xi32>
    %43 = arith.extui %42 : vector<1x256xi1> to vector<1x256xi32>
    %44 = arith.sitofp %43 : vector<1x256xi32> to vector<1x256xf32>
    %c240_i32 = arith.constant 240 : i32
    %45 = vector.broadcast %c240_i32 : i32 to vector<1x256xi32>
    %46 = arith.cmpi slt, %32, %45 : vector<1x256xi32>
    %47 = arith.extui %46 : vector<1x256xi1> to vector<1x256xi32>
    %48 = arith.sitofp %47 : vector<1x256xi32> to vector<1x256xf32>
    %c0 = arith.constant 0 : index
    %c0_10 = arith.constant 0 : index
    %49 = vector.load %arg1[%c0, %c0_10] : memref<8x256xf32, #tpu.memory_space<vmem>>, vector<8x256xf32>
    %c1_i32_11 = arith.constant 1 : i32
    %50 = tpu.dynamic_rotate %49 by %c1_i32_11 dim 1 : vector<8x256xf32>, i32 -> vector<8x256xf32>
    %51 = vector.broadcast %36 : vector<1x256xf32> to vector<8x256xf32>
    %52 = arith.mulf %50, %51 : vector<8x256xf32>
    %c255_i32 = arith.constant 255 : i32
    %53 = tpu.dynamic_rotate %49 by %c255_i32 dim 1 : vector<8x256xf32>, i32 -> vector<8x256xf32>
    %54 = vector.broadcast %40 : vector<1x256xf32> to vector<8x256xf32>
    %55 = arith.mulf %53, %54 : vector<8x256xf32>
    %56 = tpu.concatenate %52, %49, %55 in 0 : vector<8x256xf32>, vector<8x256xf32>, vector<8x256xf32> -> vector<24x256xf32>
    %c16_i32_12 = arith.constant 16 : i32
    %57 = tpu.dynamic_rotate %56 by %c16_i32_12 dim 1 : vector<24x256xf32>, i32 -> vector<24x256xf32>
    %58 = vector.broadcast %44 : vector<1x256xf32> to vector<24x256xf32>
    %59 = arith.mulf %57, %58 : vector<24x256xf32>
    %c240_i32_13 = arith.constant 240 : i32
    %60 = tpu.dynamic_rotate %56 by %c240_i32_13 dim 1 : vector<24x256xf32>, i32 -> vector<24x256xf32>
    %61 = vector.broadcast %48 : vector<1x256xf32> to vector<24x256xf32>
    %62 = arith.mulf %60, %61 : vector<24x256xf32>
    %63 = tpu.concatenate %59, %56, %62 in 0 : vector<24x256xf32>, vector<24x256xf32>, vector<24x256xf32> -> vector<72x256xf32>
    %c0_14 = arith.constant 0 : index
    %c0_15 = arith.constant 0 : index
    %64 = vector.load %arg2[%c0_14, %c0_15] : memref<16x72xbf16, #tpu.memory_space<vmem>>, vector<16x72xbf16>
    %65 = arith.truncf %63 : vector<72x256xf32> to vector<72x256xbf16>
    %cst = arith.constant dense<0.000000e+00> : vector<16x256xf32>
    %66 = tpu.matmul %64, %65, %cst {dimension_numbers = #tpu.dot_dimension_numbers<[1], [0], [0], [1], [0, 0, 1, 1], [], []>} : vector<16x72xbf16>, vector<72x256xbf16>, vector<16x256xf32> -> vector<16x256xf32>
    %c0_16 = arith.constant 0 : index
    %c0_17 = arith.constant 0 : index
    %67 = vector.load %arg3[%c0_16, %c0_17] : memref<16x1xf32, #tpu.memory_space<vmem>>, vector<16x1xf32>
    %68 = vector.broadcast %67 : vector<16x1xf32> to vector<16x256xf32>
    %69 = arith.addf %66, %68 : vector<16x256xf32>
    %cst_18 = arith.constant 0.000000e+00 : f32
    %70 = vector.broadcast %cst_18 : f32 to vector<16x256xf32>
    %71 = arith.maximumf %69, %70 : vector<16x256xf32>
    %c1_i32_19 = arith.constant 1 : i32
    %72 = tpu.dynamic_rotate %71 by %c1_i32_19 dim 1 : vector<16x256xf32>, i32 -> vector<16x256xf32>
    %73 = vector.broadcast %36 : vector<1x256xf32> to vector<16x256xf32>
    %74 = arith.mulf %72, %73 : vector<16x256xf32>
    %c255_i32_20 = arith.constant 255 : i32
    %75 = tpu.dynamic_rotate %71 by %c255_i32_20 dim 1 : vector<16x256xf32>, i32 -> vector<16x256xf32>
    %76 = vector.broadcast %40 : vector<1x256xf32> to vector<16x256xf32>
    %77 = arith.mulf %75, %76 : vector<16x256xf32>
    %78 = tpu.concatenate %74, %71, %77 in 0 : vector<16x256xf32>, vector<16x256xf32>, vector<16x256xf32> -> vector<48x256xf32>
    %c16_i32_21 = arith.constant 16 : i32
    %79 = tpu.dynamic_rotate %78 by %c16_i32_21 dim 1 : vector<48x256xf32>, i32 -> vector<48x256xf32>
    %80 = vector.broadcast %44 : vector<1x256xf32> to vector<48x256xf32>
    %81 = arith.mulf %79, %80 : vector<48x256xf32>
    %c240_i32_22 = arith.constant 240 : i32
    %82 = tpu.dynamic_rotate %78 by %c240_i32_22 dim 1 : vector<48x256xf32>, i32 -> vector<48x256xf32>
    %83 = vector.broadcast %48 : vector<1x256xf32> to vector<48x256xf32>
    %84 = arith.mulf %82, %83 : vector<48x256xf32>
    %85 = tpu.concatenate %81, %78, %84 in 0 : vector<48x256xf32>, vector<48x256xf32>, vector<48x256xf32> -> vector<144x256xf32>
    %c0_23 = arith.constant 0 : index
    %c0_24 = arith.constant 0 : index
    %86 = vector.load %arg4[%c0_23, %c0_24] : memref<8x144xbf16, #tpu.memory_space<vmem>>, vector<8x144xbf16>
    %87 = arith.truncf %85 : vector<144x256xf32> to vector<144x256xbf16>
    %cst_25 = arith.constant dense<0.000000e+00> : vector<8x256xf32>
    %88 = tpu.matmul %86, %87, %cst_25 {dimension_numbers = #tpu.dot_dimension_numbers<[1], [0], [0], [1], [0, 0, 1, 1], [], []>} : vector<8x144xbf16>, vector<144x256xbf16>, vector<8x256xf32> -> vector<8x256xf32>
    %c0_26 = arith.constant 0 : index
    %c0_27 = arith.constant 0 : index
    %89 = vector.load %arg5[%c0_26, %c0_27] : memref<8x1xf32, #tpu.memory_space<vmem>>, vector<8x1xf32>
    %90 = vector.broadcast %89 : vector<8x1xf32> to vector<8x256xf32>
    %91 = arith.addf %88, %90 : vector<8x256xf32>
    %cst_28 = arith.constant 0.000000e+00 : f32
    %92 = vector.broadcast %cst_28 : f32 to vector<8x256xf32>
    %93 = arith.maximumf %91, %92 : vector<8x256xf32>
    %c1_i32_29 = arith.constant 1 : i32
    %94 = tpu.dynamic_rotate %93 by %c1_i32_29 dim 1 : vector<8x256xf32>, i32 -> vector<8x256xf32>
    %95 = vector.broadcast %36 : vector<1x256xf32> to vector<8x256xf32>
    %96 = arith.mulf %94, %95 : vector<8x256xf32>
    %c255_i32_30 = arith.constant 255 : i32
    %97 = tpu.dynamic_rotate %93 by %c255_i32_30 dim 1 : vector<8x256xf32>, i32 -> vector<8x256xf32>
    %98 = vector.broadcast %40 : vector<1x256xf32> to vector<8x256xf32>
    %99 = arith.mulf %97, %98 : vector<8x256xf32>
    %100 = tpu.concatenate %96, %93, %99 in 0 : vector<8x256xf32>, vector<8x256xf32>, vector<8x256xf32> -> vector<24x256xf32>
    %c16_i32_31 = arith.constant 16 : i32
    %101 = tpu.dynamic_rotate %100 by %c16_i32_31 dim 1 : vector<24x256xf32>, i32 -> vector<24x256xf32>
    %102 = vector.broadcast %44 : vector<1x256xf32> to vector<24x256xf32>
    %103 = arith.mulf %101, %102 : vector<24x256xf32>
    %c240_i32_32 = arith.constant 240 : i32
    %104 = tpu.dynamic_rotate %100 by %c240_i32_32 dim 1 : vector<24x256xf32>, i32 -> vector<24x256xf32>
    %105 = vector.broadcast %48 : vector<1x256xf32> to vector<24x256xf32>
    %106 = arith.mulf %104, %105 : vector<24x256xf32>
    %107 = tpu.concatenate %103, %100, %106 in 0 : vector<24x256xf32>, vector<24x256xf32>, vector<24x256xf32> -> vector<72x256xf32>
    %c0_33 = arith.constant 0 : index
    %c0_34 = arith.constant 0 : index
    %108 = vector.load %arg6[%c0_33, %c0_34] : memref<8x72xbf16, #tpu.memory_space<vmem>>, vector<8x72xbf16>
    %109 = arith.truncf %107 : vector<72x256xf32> to vector<72x256xbf16>
    %cst_35 = arith.constant dense<0.000000e+00> : vector<8x256xf32>
    %110 = tpu.matmul %108, %109, %cst_35 {dimension_numbers = #tpu.dot_dimension_numbers<[1], [0], [0], [1], [0, 0, 1, 1], [], []>} : vector<8x72xbf16>, vector<72x256xbf16>, vector<8x256xf32> -> vector<8x256xf32>
    %c0_36 = arith.constant 0 : index
    %c0_37 = arith.constant 0 : index
    %111 = vector.load %arg7[%c0_36, %c0_37] : memref<8x1xf32, #tpu.memory_space<vmem>>, vector<8x1xf32>
    %112 = vector.broadcast %111 : vector<8x1xf32> to vector<8x256xf32>
    %113 = arith.addf %110, %112 : vector<8x256xf32>
    %cst_38 = arith.constant 0.000000e+00 : f32
    %114 = vector.broadcast %cst_38 : f32 to vector<8x256xf32>
    %115 = arith.maximumf %113, %114 : vector<8x256xf32>
    %c1_i32_39 = arith.constant 1 : i32
    %116 = tpu.dynamic_rotate %115 by %c1_i32_39 dim 1 : vector<8x256xf32>, i32 -> vector<8x256xf32>
    %117 = vector.broadcast %36 : vector<1x256xf32> to vector<8x256xf32>
    %118 = arith.mulf %116, %117 : vector<8x256xf32>
    %c255_i32_40 = arith.constant 255 : i32
    %119 = tpu.dynamic_rotate %115 by %c255_i32_40 dim 1 : vector<8x256xf32>, i32 -> vector<8x256xf32>
    %120 = vector.broadcast %40 : vector<1x256xf32> to vector<8x256xf32>
    %121 = arith.mulf %119, %120 : vector<8x256xf32>
    %122 = tpu.concatenate %118, %115, %121 in 0 : vector<8x256xf32>, vector<8x256xf32>, vector<8x256xf32> -> vector<24x256xf32>
    %c16_i32_41 = arith.constant 16 : i32
    %123 = tpu.dynamic_rotate %122 by %c16_i32_41 dim 1 : vector<24x256xf32>, i32 -> vector<24x256xf32>
    %124 = vector.broadcast %44 : vector<1x256xf32> to vector<24x256xf32>
    %125 = arith.mulf %123, %124 : vector<24x256xf32>
    %c240_i32_42 = arith.constant 240 : i32
    %126 = tpu.dynamic_rotate %122 by %c240_i32_42 dim 1 : vector<24x256xf32>, i32 -> vector<24x256xf32>
    %127 = vector.broadcast %48 : vector<1x256xf32> to vector<24x256xf32>
    %128 = arith.mulf %126, %127 : vector<24x256xf32>
    %129 = tpu.concatenate %125, %122, %128 in 0 : vector<24x256xf32>, vector<24x256xf32>, vector<24x256xf32> -> vector<72x256xf32>
    %c0_43 = arith.constant 0 : index
    %c0_44 = arith.constant 0 : index
    %130 = vector.load %arg8[%c0_43, %c0_44] : memref<8x72xbf16, #tpu.memory_space<vmem>>, vector<8x72xbf16>
    %131 = arith.truncf %129 : vector<72x256xf32> to vector<72x256xbf16>
    %cst_45 = arith.constant dense<0.000000e+00> : vector<8x256xf32>
    %132 = tpu.matmul %130, %131, %cst_45 {dimension_numbers = #tpu.dot_dimension_numbers<[1], [0], [0], [1], [0, 0, 1, 1], [], []>} : vector<8x72xbf16>, vector<72x256xbf16>, vector<8x256xf32> -> vector<8x256xf32>
    %c0_46 = arith.constant 0 : index
    %c0_47 = arith.constant 0 : index
    %133 = vector.load %arg9[%c0_46, %c0_47] : memref<8x1xf32, #tpu.memory_space<vmem>>, vector<8x1xf32>
    %134 = vector.broadcast %133 : vector<8x1xf32> to vector<8x256xf32>
    %135 = arith.addf %132, %134 : vector<8x256xf32>
    %cst_48 = arith.constant 0.000000e+00 : f32
    %136 = vector.broadcast %cst_48 : f32 to vector<8x256xf32>
    %137 = arith.maximumf %135, %136 : vector<8x256xf32>
    %cst_49 = arith.constant 0.000000e+00 : f32
    %138 = vector.broadcast %cst_49 : f32 to vector<4x256xf32>
    %c0_50 = arith.constant 0 : index
    %c0_51 = arith.constant 0 : index
    %139 = vector.load %arg10[%c0_50, %c0_51] : memref<4x8xf32, #tpu.memory_space<vmem>>, vector<4x1xf32>
    %140 = vector.extract_strided_slice %137 {offsets = [0, 0], sizes = [1, 256], strides = [1, 1]} : vector<8x256xf32> to vector<1x256xf32>
    %141 = vector.broadcast %139 : vector<4x1xf32> to vector<4x256xf32>
    %142 = vector.broadcast %140 : vector<1x256xf32> to vector<4x256xf32>
    %143 = arith.mulf %141, %142 : vector<4x256xf32>
    %144 = arith.addf %138, %143 : vector<4x256xf32>
    %c0_52 = arith.constant 0 : index
    %c1 = arith.constant 1 : index
    %145 = vector.load %arg10[%c0_52, %c1] : memref<4x8xf32, #tpu.memory_space<vmem>>, vector<4x1xf32>
    %146 = vector.extract_strided_slice %137 {offsets = [1, 0], sizes = [1, 256], strides = [1, 1]} : vector<8x256xf32> to vector<1x256xf32>
    %147 = vector.broadcast %145 : vector<4x1xf32> to vector<4x256xf32>
    %148 = vector.broadcast %146 : vector<1x256xf32> to vector<4x256xf32>
    %149 = arith.mulf %147, %148 : vector<4x256xf32>
    %150 = arith.addf %144, %149 : vector<4x256xf32>
    %c0_53 = arith.constant 0 : index
    %c0_54 = arith.constant 0 : index
    %151 = vector.load %arg11[%c0_53, %c0_54] : memref<4x1xf32, #tpu.memory_space<vmem>>, vector<4x1xf32>
    %152 = vector.broadcast %151 : vector<4x1xf32> to vector<4x256xf32>
    %153 = arith.addf %150, %152 : vector<4x256xf32>
    %c0_55 = arith.constant 0 : index
    %c0_56 = arith.constant 0 : index
    %154 = vector.load %arg12[%c0_55, %c0_56] : memref<4x256xf32, #tpu.memory_space<vmem>>, vector<4x256xf32>
    tpu.vector_store %arg12[%c0_55, %c0_56], %153 {strides = array<i32>} : memref<4x256xf32, #tpu.memory_space<vmem>>, vector<4x256xf32>,
    return
  }
  func.func @transform_0(%arg0: i32) -> (i32, i32) {
    %c0_i32 = arith.constant 0 : i32
    %c0_i32_0 = arith.constant 0 : i32
    return %c0_i32, %arg0 : i32, i32
  }
  func.func @transform_1(%arg0: i32) -> (i32, i32) {
    %c0_i32 = arith.constant 0 : i32
    %c0_i32_0 = arith.constant 0 : i32
    %c0_i32_1 = arith.constant 0 : i32
    return %c0_i32, %c0_i32_0 : i32, i32
  }
  func.func @transform_2(%arg0: i32) -> (i32, i32) {
    %c0_i32 = arith.constant 0 : i32
    %c0_i32_0 = arith.constant 0 : i32
    %c0_i32_1 = arith.constant 0 : i32
    return %c0_i32, %c0_i32_0 : i32, i32
  }
  func.func @transform_3(%arg0: i32) -> (i32, i32) {
    %c0_i32 = arith.constant 0 : i32
    %c0_i32_0 = arith.constant 0 : i32
    %c0_i32_1 = arith.constant 0 : i32
    return %c0_i32, %c0_i32_0 : i32, i32
  }
  func.func @transform_4(%arg0: i32) -> (i32, i32) {
    %c0_i32 = arith.constant 0 : i32
    %c0_i32_0 = arith.constant 0 : i32
    %c0_i32_1 = arith.constant 0 : i32
    return %c0_i32, %c0_i32_0 : i32, i32
  }
  func.func @transform_5(%arg0: i32) -> (i32, i32) {
    %c0_i32 = arith.constant 0 : i32
    %c0_i32_0 = arith.constant 0 : i32
    %c0_i32_1 = arith.constant 0 : i32
    return %c0_i32, %c0_i32_0 : i32, i32
  }
  func.func @transform_6(%arg0: i32) -> (i32, i32) {
    %c0_i32 = arith.constant 0 : i32
    %c0_i32_0 = arith.constant 0 : i32
    %c0_i32_1 = arith.constant 0 : i32
    return %c0_i32, %c0_i32_0 : i32, i32
  }
  func.func @transform_7(%arg0: i32) -> (i32, i32) {
    %c0_i32 = arith.constant 0 : i32
    %c0_i32_0 = arith.constant 0 : i32
    %c0_i32_1 = arith.constant 0 : i32
    return %c0_i32, %c0_i32_0 : i32, i32
  }
  func.func @transform_8(%arg0: i32) -> (i32, i32) {
    %c0_i32 = arith.constant 0 : i32
    %c0_i32_0 = arith.constant 0 : i32
    %c0_i32_1 = arith.constant 0 : i32
    return %c0_i32, %c0_i32_0 : i32, i32
  }
  func.func @transform_9(%arg0: i32) -> (i32, i32) {
    %c0_i32 = arith.constant 0 : i32
    %c0_i32_0 = arith.constant 0 : i32
    %c0_i32_1 = arith.constant 0 : i32
    return %c0_i32, %c0_i32_0 : i32, i32
  }
  func.func @transform_10(%arg0: i32) -> (i32, i32) {
    %c0_i32 = arith.constant 0 : i32
    %c0_i32_0 = arith.constant 0 : i32
    %c0_i32_1 = arith.constant 0 : i32
    return %c0_i32, %c0_i32_0 : i32, i32
  }
  func.func @transform_11(%arg0: i32) -> (i32, i32) {
    %c0_i32 = arith.constant 0 : i32
    %c0_i32_0 = arith.constant 0 : i32
    return %c0_i32, %arg0 : i32, i32
  }
}

</mosaic_0001>

<llo_original>
// kernel: tpu_custom_call.1
$region0: #{tpu_custom_call.1}
  #allocation0 [shape = 'u32[]', space=smem, size = 0x4, offset = 0x4, fixed_abs, tag = 'smem constant byte address 0x4 - core index']
  #allocation1 [shape = 'u32[72,128]{1,0:T(1,128)}', space=vmem, size = 0x9000, scoped, tag = 'internal scratch']
  %s0 = inlined_call_operand.hbm [shape: f32[8,512], index: 0, kind: input, shape index: {}]
  %s1 = inlined_call_operand.vmem [shape: bf16[16,72], index: 1, kind: input, shape index: {}]
  %s2 = inlined_call_operand.vmem [shape: f32[16,1], index: 2, kind: input, shape index: {}]
  %s3 = inlined_call_operand.vmem [shape: bf16[8,144], index: 3, kind: input, shape index: {}]
  %s4 = inlined_call_operand.vmem [shape: f32[8,1], index: 4, kind: input, shape index: {}]
  %s5 = inlined_call_operand.vmem [shape: bf16[8,72], index: 5, kind: input, shape index: {}]
  %s6 = inlined_call_operand.vmem [shape: f32[8,1], index: 6, kind: input, shape index: {}]
  %s7 = inlined_call_operand.vmem [shape: bf16[8,72], index: 7, kind: input, shape index: {}]
  %s8 = inlined_call_operand.vmem [shape: f32[8,1], index: 8, kind: input, shape index: {}]
  %s9 = inlined_call_operand.vmem [shape: f32[4,8], index: 9, kind: input, shape index: {}]
  %s10 = inlined_call_operand.vmem [shape: f32[4,1], index: 10, kind: input, shape index: {}]
  %s11 = inlined_call_operand.hbm [shape: f32[4,512], index: 11, kind: output, shape index: {}]
  %s12 = sld [smem:[#allocation0]]
  $region81: #{tpu_custom_call.1} parent=0
    _
  %s14 = ssub.s32 1, %s12
  %s15 = scalar_select 0, %s14, %s12
  $region1: #{tpu_custom_call.1} parent=0
    #allocation2 [shape = 'u8[16384]{0}', space=vmem, size = 0x4000, scoped, tag = 'input window, operand 0']
    #allocation3 [shape = 's32[2]{0}', space=sflag, size = 0x8, scoped, tag = 'scoped memory for tpu_custom_call.1']
    #allocation4 [shape = 's32[2]{0}', space=sflag, size = 0x8, scoped, tag = 'scoped memory for tpu_custom_call.1']
    #allocation5 [shape = 'u8[8192]{0}', space=vmem, size = 0x2000, scoped, tag = 'output window, operand 0']
    %16 = vsyncpa [#allocation3], 0
    %s17 = scalar_lea.sflag [#allocation3], 1
    %18 = vsyncpa %s17, 0
    %19 = vsyncpa [#allocation4], 0
    %s20 = scalar_lea.sflag [#allocation4], 1
    %21 = vsyncpa %s20, 0
    loop: start=0, step=1, limit=4
    $region2: #{tpu_custom_call.1} parent=1 // loop_pre_header
      _
    $region3: #{tpu_custom_call.1} parent=1 // loop_header
      %s23 = sphi 0, %s27
      %p24 = scmp.ge.s32.totalorder %s23, 4
      %s33 = sphi 0, %s35
      %s36 = sphi 0, %s33
      %s37 = sphi 0, %s36
      %s53 = sphi 0, %s37
      %s57 = sphi 0, %s57
      %s59 = sphi 0, %s57
      %s60 = sphi 0, %s59
      %s74 = sphi 0, %s60
      %s78 = sphi 0, %s78
      %s80 = sphi 0, %s78
      %s81 = sphi 0, %s80
      %s95 = sphi 0, %s81
      %s99 = sphi 0, %s99
      %s101 = sphi 0, %s99
      %s102 = sphi 0, %s101
      %s116 = sphi 0, %s102
      %s120 = sphi 0, %s120
      %s122 = sphi 0, %s120
      %s123 = sphi 0, %s122
      %s137 = sphi 0, %s123
      %s141 = sphi 0, %s141
      %s143 = sphi 0, %s141
      %s144 = sphi 0, %s143
      %s158 = sphi 0, %s144
      %s162 = sphi 0, %s162
      %s164 = sphi 0, %s162
      %s165 = sphi 0, %s164
      %s179 = sphi 0, %s165
      %s183 = sphi 0, %s183
      %s185 = sphi 0, %s183
      %s186 = sphi 0, %s185
      %s200 = sphi 0, %s186
      %s204 = sphi 0, %s204
      %s206 = sphi 0, %s204
      %s207 = sphi 0, %s206
      %s221 = sphi 0, %s207
      %s225 = sphi 0, %s225
      %s227 = sphi 0, %s225
      %s228 = sphi 0, %s227
      %s242 = sphi 0, %s228
      %s246 = sphi 0, %s246
      %s248 = sphi 0, %s246
      %s249 = sphi 0, %s248
      %s263 = sphi 0, %s249
      %s269 = sphi 0, %s271
      %s272 = sphi 0, %s269
      %s273 = sphi 0, %s272
      %s289 = sphi 0, %s273
    $region4: #{tpu_custom_call.1} parent=1 // loop_header_branch
      %26 = sbr.rel (%p24) target = $region8
    $region5: #{tpu_custom_call.1} parent=1 // loop_body
      %s28 = ssub.s32 %s23, 1
      %s29 = ssub.s32 %s23, 2
      %s30 = sadd.s32 %s23, 1
      %s31 = ssub.s32 %s23, %s30
      %p32 = scmp.eq.s32.totalorder %s31, 0
      %s34 = sadd.s32 %s33, 1
      %s35 = scalar_select %p32, %s33, %s34
      %p38 = pneg %p32
      %p39 = scmp.eq.s32.totalorder %s23, 1
      %p40 = por %p38, %p39
      %p41 = scmp.ne.s32.totalorder %s33, %s36
      %p42 = scmp.eq.s32.totalorder %s23, 0
      %p43 = por %p41, %p42
      %p44 = scmp.ne.s32.totalorder %s33, %s36
      %p45 = scmp.eq.s32.totalorder %s28, 1
      %p46 = por %p44, %p45
      %p47 = scmp.ne.s32.totalorder %s36, %s37
      %p48 = scmp.eq.s32.totalorder %s28, 0
      %p49 = por %p47, %p48
      %p50 = scmp.ne.s32.totalorder %s36, %s37
      %p51 = scmp.eq.s32.totalorder %s29, 1
      %p52 = por %p50, %p51
      %p54 = scmp.ne.s32.totalorder %s37, %s53
      %p55 = scmp.eq.s32.totalorder %s29, 0
      %p56 = por %p54, %p55
      %s58 = sadd.s32 %s57, 1
      %p61 = scmp.eq.s32.totalorder %s23, 1
      %p62 = scmp.ne.s32.totalorder %s57, %s59
      %p63 = scmp.eq.s32.totalorder %s23, 0
      %p64 = por %p62, %p63
      %p65 = scmp.ne.s32.totalorder %s57, %s59
      %p66 = scmp.eq.s32.totalorder %s28, 1
      %p67 = por %p65, %p66
      %p68 = scmp.ne.s32.totalorder %s59, %s60
      %p69 = scmp.eq.s32.totalorder %s28, 0
      %p70 = por %p68, %p69
      %p71 = scmp.ne.s32.totalorder %s59, %s60
      %p72 = scmp.eq.s32.totalorder %s29, 1
      %p73 = por %p71, %p72
      %p75 = scmp.ne.s32.totalorder %s60, %s74
      %p76 = scmp.eq.s32.totalorder %s29, 0
      %p77 = por %p75, %p76
      %s79 = sadd.s32 %s78, 1
      %p82 = scmp.eq.s32.totalorder %s23, 1
      %p83 = scmp.ne.s32.totalorder %s78, %s80
      %p84 = scmp.eq.s32.totalorder %s23, 0
      %p85 = por %p83, %p84
      %p86 = scmp.ne.s32.totalorder %s78, %s80
      %p87 = scmp.eq.s32.totalorder %s28, 1
      %p88 = por %p86, %p87
      %p89 = scmp.ne.s32.totalorder %s80, %s81
      %p90 = scmp.eq.s32.totalorder %s28, 0
      %p91 = por %p89, %p90
      %p92 = scmp.ne.s32.totalorder %s80, %s81
      %p93 = scmp.eq.s32.totalorder %s29, 1
      %p94 = por %p92, %p93
      %p96 = scmp.ne.s32.totalorder %s81, %s95
      %p97 = scmp.eq.s32.totalorder %s29, 0
      %p98 = por %p96, %p97
      %s100 = sadd.s32 %s99, 1
      %p103 = scmp.eq.s32.totalorder %s23, 1
      %p104 = scmp.ne.s32.totalorder %s99, %s101
      %p105 = scmp.eq.s32.totalorder %s23, 0
      %p106 = por %p104, %p105
      %p107 = scmp.ne.s32.totalorder %s99, %s101
      %p108 = scmp.eq.s32.totalorder %s28, 1
      %p109 = por %p107, %p108
      %p110 = scmp.ne.s32.totalorder %s101, %s102
      %p111 = scmp.eq.s32.totalorder %s28, 0
      %p112 = por %p110, %p111
      %p113 = scmp.ne.s32.totalorder %s101, %s102
      %p114 = scmp.eq.s32.totalorder %s29, 1
      %p115 = por %p113, %p114
      %p117 = scmp.ne.s32.totalorder %s102, %s116
      %p118 = scmp.eq.s32.totalorder %s29, 0
      %p119 = por %p117, %p118
      %s121 = sadd.s32 %s120, 1
      %p124 = scmp.eq.s32.totalorder %s23, 1
      %p125 = scmp.ne.s32.totalorder %s120, %s122
      %p126 = scmp.eq.s32.totalorder %s23, 0
      %p127 = por %p125, %p126
      %p128 = scmp.ne.s32.totalorder %s120, %s122
      %p129 = scmp.eq.s32.totalorder %s28, 1
      %p130 = por %p128, %p129
      %p131 = scmp.ne.s32.totalorder %s122, %s123
      %p132 = scmp.eq.s32.totalorder %s28, 0
      %p133 = por %p131, %p132
      %p134 = scmp.ne.s32.totalorder %s122, %s123
      %p135 = scmp.eq.s32.totalorder %s29, 1
      %p136 = por %p134, %p135
      %p138 = scmp.ne.s32.totalorder %s123, %s137
      %p139 = scmp.eq.s32.totalorder %s29, 0
      %p140 = por %p138, %p139
      %s142 = sadd.s32 %s141, 1
      %p145 = scmp.eq.s32.totalorder %s23, 1
      %p146 = scmp.ne.s32.totalorder %s141, %s143
      %p147 = scmp.eq.s32.totalorder %s23, 0
      %p148 = por %p146, %p147
      %p149 = scmp.ne.s32.totalorder %s141, %s143
      %p150 = scmp.eq.s32.totalorder %s28, 1
      %p151 = por %p149, %p150
      %p152 = scmp.ne.s32.totalorder %s143, %s144
      %p153 = scmp.eq.s32.totalorder %s28, 0
      %p154 = por %p152, %p153
      %p155 = scmp.ne.s32.totalorder %s143, %s144
      %p156 = scmp.eq.s32.totalorder %s29, 1
      %p157 = por %p155, %p156
      %p159 = scmp.ne.s32.totalorder %s144, %s158
      %p160 = scmp.eq.s32.totalorder %s29, 0
      %p161 = por %p159, %p160
      %s163 = sadd.s32 %s162, 1
      %p166 = scmp.eq.s32.totalorder %s23, 1
      %p167 = scmp.ne.s32.totalorder %s162, %s164
      %p168 = scmp.eq.s32.totalorder %s23, 0
      %p169 = por %p167, %p168
      %p170 = scmp.ne.s32.totalorder %s162, %s164
      %p171 = scmp.eq.s32.totalorder %s28, 1
      %p172 = por %p170, %p171
      %p173 = scmp.ne.s32.totalorder %s164, %s165
      %p174 = scmp.eq.s32.totalorder %s28, 0
      %p175 = por %p173, %p174
      %p176 = scmp.ne.s32.totalorder %s164, %s165
      %p177 = scmp.eq.s32.totalorder %s29, 1
      %p178 = por %p176, %p177
      %p180 = scmp.ne.s32.totalorder %s165, %s179
      %p181 = scmp.eq.s32.totalorder %s29, 0
      %p182 = por %p180, %p181
      %s184 = sadd.s32 %s183, 1
      %p187 = scmp.eq.s32.totalorder %s23, 1
      %p188 = scmp.ne.s32.totalorder %s183, %s185
      %p189 = scmp.eq.s32.totalorder %s23, 0
      %p190 = por %p188, %p189
      %p191 = scmp.ne.s32.totalorder %s183, %s185
      %p192 = scmp.eq.s32.totalorder %s28, 1
      %p193 = por %p191, %p192
      %p194 = scmp.ne.s32.totalorder %s185, %s186
      %p195 = scmp.eq.s32.totalorder %s28, 0
      %p196 = por %p194, %p195
      %p197 = scmp.ne.s32.totalorder %s185, %s186
      %p198 = scmp.eq.s32.totalorder %s29, 1
      %p199 = por %p197, %p198
      %p201 = scmp.ne.s32.totalorder %s186, %s200
      %p202 = scmp.eq.s32.totalorder %s29, 0
      %p203 = por %p201, %p202
      %s205 = sadd.s32 %s204, 1
      %p208 = scmp.eq.s32.totalorder %s23, 1
      %p209 = scmp.ne.s32.totalorder %s204, %s206
      %p210 = scmp.eq.s32.totalorder %s23, 0
      %p211 = por %p209, %p210
      %p212 = scmp.ne.s32.totalorder %s204, %s206
      %p213 = scmp.eq.s32.totalorder %s28, 1
      %p214 = por %p212, %p213
      %p215 = scmp.ne.s32.totalorder %s206, %s207
      %p216 = scmp.eq.s32.totalorder %s28, 0
      %p217 = por %p215, %p216
      %p218 = scmp.ne.s32.totalorder %s206, %s207
      %p219 = scmp.eq.s32.totalorder %s29, 1
      %p220 = por %p218, %p219
      %p222 = scmp.ne.s32.totalorder %s207, %s221
      %p223 = scmp.eq.s32.totalorder %s29, 0
      %p224 = por %p222, %p223
      %s226 = sadd.s32 %s225, 1
      %p229 = scmp.eq.s32.totalorder %s23, 1
      %p230 = scmp.ne.s32.totalorder %s225, %s227
      %p231 = scmp.eq.s32.totalorder %s23, 0
      %p232 = por %p230, %p231
      %p233 = scmp.ne.s32.totalorder %s225, %s227
      %p234 = scmp.eq.s32.totalorder %s28, 1
      %p235 = por %p233, %p234
      %p236 = scmp.ne.s32.totalorder %s227, %s228
      %p237 = scmp.eq.s32.totalorder %s28, 0
      %p238 = por %p236, %p237
      %p239 = scmp.ne.s32.totalorder %s227, %s228
      %p240 = scmp.eq.s32.totalorder %s29, 1
      %p241 = por %p239, %p240
      %p243 = scmp.ne.s32.totalorder %s228, %s242
      %p244 = scmp.eq.s32.totalorder %s29, 0
      %p245 = por %p243, %p244
      %s247 = sadd.s32 %s246, 1
      %p250 = scmp.eq.s32.totalorder %s23, 1
      %p251 = scmp.ne.s32.totalorder %s246, %s248
      %p252 = scmp.eq.s32.totalorder %s23, 0
      %p253 = por %p251, %p252
      %p254 = scmp.ne.s32.totalorder %s246, %s248
      %p255 = scmp.eq.s32.totalorder %s28, 1
      %p256 = por %p254, %p255
      %p257 = scmp.ne.s32.totalorder %s248, %s249
      %p258 = scmp.eq.s32.totalorder %s28, 0
      %p259 = por %p257, %p258
      %p260 = scmp.ne.s32.totalorder %s248, %s249
      %p261 = scmp.eq.s32.totalorder %s29, 1
      %p262 = por %p260, %p261
      %p264 = scmp.ne.s32.totalorder %s249, %s263
      %p265 = scmp.eq.s32.totalorder %s29, 0
      %p266 = por %p264, %p265
      %s267 = ssub.s32 %s23, %s30
      %p268 = scmp.eq.s32.totalorder %s267, 0
      %s270 = sadd.s32 %s269, 1
      %s271 = scalar_select %p268, %s269, %s270
      %p274 = pneg %p268
      %p275 = scmp.eq.s32.totalorder %s23, 1
      %p276 = por %p274, %p275
      %p277 = scmp.ne.s32.totalorder %s269, %s272
      %p278 = scmp.eq.s32.totalorder %s23, 0
      %p279 = por %p277, %p278
      %p280 = scmp.ne.s32.totalorder %s269, %s272
      %p281 = scmp.eq.s32.totalorder %s28, 1
      %p282 = por %p280, %p281
      %p283 = scmp.ne.s32.totalorder %s272, %s273
      %p284 = scmp.eq.s32.totalorder %s28, 0
      %p285 = por %p283, %p284
      %p286 = scmp.ne.s32.totalorder %s272, %s273
      %p287 = scmp.eq.s32.totalorder %s29, 1
      %p288 = por %p286, %p287
      %p290 = scmp.ne.s32.totalorder %s273, %s289
      %p291 = scmp.eq.s32.totalorder %s29, 0
      %p292 = por %p290, %p291
      %p293 = scmp.le.s32.totalorder 1, %s23
      %p294 = scmp.lt.s32.totalorder %s23, 3
      %p295 = pnand %p293, %p294
      %p296 = pneg %p295
      // Predicated region
      $region9: #{tpu_custom_call.1} parent=5 // pred_check
        _
      $region10: #{tpu_custom_call.1} parent=5 // pred_check_branch
        %298 = sbr.rel (%p295) target = $region12
      $region11: #{tpu_custom_call.1} parent=5 // pred_region
        %s299 = ssub.s32 %s23, 1
        // Predicated region
        $region13: #{tpu_custom_call.1} parent=11 // pred_check
          %p300 = pneg %p70
        $region14: #{tpu_custom_call.1} parent=11 // pred_check_branch
          %302 = sbr.rel (%p300) target = $region16
        $region15: #{tpu_custom_call.1} parent=11 // pred_region
          _
        $region16: #{tpu_custom_call.1} parent=11 // pred_fallthru
          _
        // Predicated region
        $region17: #{tpu_custom_call.1} parent=11 // pred_check
          %p303 = pneg %p91
        $region18: #{tpu_custom_call.1} parent=11 // pred_check_branch
          %305 = sbr.rel (%p303) target = $region20
        $region19: #{tpu_custom_call.1} parent=11 // pred_region
          _
        $region20: #{tpu_custom_call.1} parent=11 // pred_fallthru
          _
        // Predicated region
        $region21: #{tpu_custom_call.1} parent=11 // pred_check
          %p306 = pneg %p112
        $region22: #{tpu_custom_call.1} parent=11 // pred_check_branch
          %308 = sbr.rel (%p306) target = $region24
        $region23: #{tpu_custom_call.1} parent=11 // pred_region
          _
        $region24: #{tpu_custom_call.1} parent=11 // pred_fallthru
          _
        // Predicated region
        $region25: #{tpu_custom_call.1} parent=11 // pred_check
          %p309 = pneg %p133
        $region26: #{tpu_custom_call.1} parent=11 // pred_check_branch
          %311 = sbr.rel (%p309) target = $region28
        $region27: #{tpu_custom_call.1} parent=11 // pred_region
          _
        $region28: #{tpu_custom_call.1} parent=11 // pred_fallthru
          _
        // Predicated region
        $region29: #{tpu_custom_call.1} parent=11 // pred_check
          %p312 = pneg %p154
        $region30: #{tpu_custom_call.1} parent=11 // pred_check_branch
          %314 = sbr.rel (%p312) target = $region32
        $region31: #{tpu_custom_call.1} parent=11 // pred_region
          _
        $region32: #{tpu_custom_call.1} parent=11 // pred_fallthru
          _
        // Predicated region
        $region33: #{tpu_custom_call.1} parent=11 // pred_check
          %p315 = pneg %p175
        $region34: #{tpu_custom_call.1} parent=11 // pred_check_branch
          %317 = sbr.rel (%p315) target = $region36
        $region35: #{tpu_custom_call.1} parent=11 // pred_region
          _
        $region36: #{tpu_custom_call.1} parent=11 // pred_fallthru
          _
        // Predicated region
        $region37: #{tpu_custom_call.1} parent=11 // pred_check
          %p318 = pneg %p196
        $region38: #{tpu_custom_call.1} parent=11 // pred_check_branch
          %320 = sbr.rel (%p318) target = $region40
        $region39: #{tpu_custom_call.1} parent=11 // pred_region
          _
        $region40: #{tpu_custom_call.1} parent=11 // pred_fallthru
          _
        // Predicated region
        $region41: #{tpu_custom_call.1} parent=11 // pred_check
          %p321 = pneg %p217
        $region42: #{tpu_custom_call.1} parent=11 // pred_check_branch
          %323 = sbr.rel (%p321) target = $region44
        $region43: #{tpu_custom_call.1} parent=11 // pred_region
          _
        $region44: #{tpu_custom_call.1} parent=11 // pred_fallthru
          _
        // Predicated region
        $region45: #{tpu_custom_call.1} parent=11 // pred_check
          %p324 = pneg %p238
        $region46: #{tpu_custom_call.1} parent=11 // pred_check_branch
          %326 = sbr.rel (%p324) target = $region48
        $region47: #{tpu_custom_call.1} parent=11 // pred_region
          _
        $region48: #{tpu_custom_call.1} parent=11 // pred_fallthru
          _
        // Predicated region
        $region49: #{tpu_custom_call.1} parent=11 // pred_check
          %p327 = pneg %p259
        $region50: #{tpu_custom_call.1} parent=11 // pred_check_branch
          %329 = sbr.rel (%p327) target = $region52
        $region51: #{tpu_custom_call.1} parent=11 // pred_region
          _
        $region52: #{tpu_custom_call.1} parent=11 // pred_fallthru
          _
      $region12: #{tpu_custom_call.1} parent=5 // pred_fallthru
        _
      %p330 = scmp.lt.s32.totalorder %s23, 2
      // Predicated region
      $region53: #{tpu_custom_call.1} parent=5 // pred_check
        %p331 = pneg %p330
      $region54: #{tpu_custom_call.1} parent=5 // pred_check_branch
        %333 = sbr.rel (%p331) target = $region56
      $region55: #{tpu_custom_call.1} parent=5 // pred_region
        // Predicated region
        $region57: #{tpu_custom_call.1} parent=55 // pred_check
          %p334 = pneg %p43
        $region58: #{tpu_custom_call.1} parent=55 // pred_check_branch
          %336 = sbr.rel (%p334) target = $region60
        $region59: #{tpu_custom_call.1} parent=55 // pred_region
          %s337 = sand.u32 %s33, 1
          %s338 = scalar_lea.sflag [#allocation3], %s337
          %s339 = sand.u32 %s33, 1
          %s340 = smul.addr %s339, 16
          %s341 = scalar_lea.vmem [#allocation2], %s340
          %s342 = smul.u32 2, %s23
          %344 = vsyncadd %s338, 0
          %s345 = smul.addr %s342, 8
          %s346 = scalar_lea.hbm %s0, %s345
          %s348 = sshll.u32 %s346, 4
          %s349 = int_to_ptr.hbm [resolvable:$true] %s348
          %s350 = sshll.u32 %s341, 4
          %s351 = int_to_ptr.vmem [resolvable:$true] %s350
          %353 = dma.hbm_to_vmem [thread:$0]  %s349, 256, %s351, %s338
        $region60: #{tpu_custom_call.1} parent=55 // pred_fallthru
          _
      $region56: #{tpu_custom_call.1} parent=5 // pred_fallthru
        _
      %p354 = scmp.le.s32.totalorder 1, %s23
      %p355 = scmp.lt.s32.totalorder %s23, 3
      %p356 = pnand %p354, %p355
      %p357 = pneg %p356
      // Predicated region
      $region61: #{tpu_custom_call.1} parent=5 // pred_check
        _
      $region62: #{tpu_custom_call.1} parent=5 // pred_check_branch
        %359 = sbr.rel (%p356) target = $region64
      $region63: #{tpu_custom_call.1} parent=5 // pred_region
        %s360 = ssub.s32 %s23, 1
        %s361 = sand.u32 %s36, 1
        %s362 = scalar_lea.sflag [#allocation3], %s361
        %s363 = sand.u32 %s36, 1
        %s364 = smul.addr %s363, 16
        %s365 = scalar_lea.vmem [#allocation2], %s364
        // Predicated region
        $region65: #{tpu_custom_call.1} parent=63 // pred_check
          %p366 = pneg %p49
        $region66: #{tpu_custom_call.1} parent=63 // pred_check_branch
          %368 = sbr.rel (%p366) target = $region68
        $region67: #{tpu_custom_call.1} parent=63 // pred_region
          %370 = dma.done %s362, 256
        $region68: #{tpu_custom_call.1} parent=63 // pred_fallthru
          _
        %s371 = sand.u32 %s36, 1
        %s372 = scalar_lea.sflag [#allocation3], %s371
        %s373 = sand.u32 %s36, 1
        %s374 = smul.addr %s373, 16
        %s375 = scalar_lea.vmem [#allocation2], %s374
        %p376 = pneg %p49
        %p377 = pneg %p46
        %p378 = pneg %p70
        %p379 = pneg %p67
        %p380 = pneg %p91
        %p381 = pneg %p88
        %p382 = pneg %p112
        %p383 = pneg %p109
        %p384 = pneg %p133
        %p385 = pneg %p130
        %p386 = pneg %p154
        %p387 = pneg %p151
        %p388 = pneg %p175
        %p389 = pneg %p172
        %p390 = pneg %p196
        %p391 = pneg %p193
        %p392 = pneg %p217
        %p393 = pneg %p214
        %p394 = pneg %p238
        %p395 = pneg %p235
        %p396 = pneg %p259
        %p397 = pneg %p256
        %p398 = pneg %p285
        %p399 = pneg %p282
        %s400 = sand.u32 %s272, 1
        %s401 = scalar_lea.sflag [#allocation4], %s400
        %s402 = sand.u32 %s272, 1
        %s403 = smul.addr %s402, 8
        %s404 = scalar_lea.vmem [#allocation5], %s403
        %s405 = smul.u32 2, %s28
        %s406 = smul.u32 2, %s28
        %v408 = vlaneseq
        %v409 = vand.u32 %v408, 127
        %v410 = vadd.s32 %v409, 128
        %vm411 = vcmp.lt.s32.totalorder %v409, 0
        %v412 = vsub.s32 0, %v409
        %v413 = vsel %vm411, %v412, %v409
        %v414 = vshrl.u32 %v413, 4
        %v415 = vand.u32 %v413, 15
        %v416 = vsub.s32 0, %v415
        %v417 = vsel %vm411, %v416, %v415
        %vm418 = vcmp.lt.s32.totalorder %v410, 0
        %v419 = vsub.s32 0, %v410
        %v420 = vsel %vm418, %v419, %v410
        %v421 = vshrl.u32 %v420, 4
        %v422 = vand.u32 %v420, 15
        %v423 = vsub.s32 0, %v422
        %v424 = vsel %vm418, %v423, %v422
        %vm425 = vcmp.ne.s32.totalorder %v417, 0
        %vm426 = vcmp.ne.s32.totalorder %v424, 0
        %vm427 = vcmp.lt.s32.totalorder %v417, 0
        %vm428 = vcmp.lt.s32.totalorder %v424, 0
        %vm429 = vmand %vm427, %vm425
        %vm430 = vmand %vm428, %vm426
        %v431 = vadd.s32 %v417, 16
        %v432 = vadd.s32 %v424, 16
        %v433 = vsel %vm429, %v431, %v417
        %v434 = vsel %vm430, %v432, %v424
        %vm435 = vcmp.lt.s32.totalorder %v409, 0
        %v436 = vsub.s32 0, %v409
        %v437 = vsel %vm435, %v436, %v409
        %v438 = vshrl.u32 %v437, 8
        %v439 = vand.u32 %v437, 255
        %v440 = vsub.s32 0, %v439
        %v441 = vsel %vm435, %v440, %v439
        %vm442 = vcmp.lt.s32.totalorder %v410, 0
        %v443 = vsub.s32 0, %v410
        %v444 = vsel %vm442, %v443, %v410
        %v445 = vshrl.u32 %v444, 8
        %v446 = vand.u32 %v444, 255
        %v447 = vsub.s32 0, %v446
        %v448 = vsel %vm442, %v447, %v446
        %vm449 = vcmp.ne.s32.totalorder %v441, 0
        %vm450 = vcmp.ne.s32.totalorder %v448, 0
        %vm451 = vcmp.lt.s32.totalorder %v441, 0
        %vm452 = vcmp.lt.s32.totalorder %v448, 0
        %vm453 = vmand %vm451, %vm449
        %vm454 = vmand %vm452, %vm450
        %v455 = vadd.s32 %v441, 256
        %v456 = vadd.s32 %v448, 256
        %v457 = vsel %vm453, %v455, %v441
        %v458 = vsel %vm454, %v456, %v448
        %vm459 = vcmp.ne.s32.totalorder %v433, 0
        %vm460 = vcmp.ne.s32.totalorder %v434, 0
        %v461 = vsel %vm459, 1, 0
        %v462 = vsel %vm460, 1, 0
        %v463 = vcvt.s32.f32 %v461
        %v464 = vcvt.s32.f32 %v462
        %vm465 = vcmp.ne.s32.totalorder %v433, 15
        %vm466 = vcmp.ne.s32.totalorder %v434, 15
        %v467 = vsel %vm465, 1, 0
        %v468 = vsel %vm466, 1, 0
        %v469 = vcvt.s32.f32 %v467
        %v470 = vcvt.s32.f32 %v468
        %vm471 = vcmp.ge.s32.totalorder %v457, 16
        %vm472 = vcmp.ge.s32.totalorder %v458, 16
        %v473 = vsel %vm471, 1, 0
        %v474 = vsel %vm472, 1, 0
        %v475 = vcvt.s32.f32 %v473
        %v476 = vcvt.s32.f32 %v474
        %vm477 = vcmp.lt.s32.totalorder %v457, 240
        %vm478 = vcmp.lt.s32.totalorder %v458, 240
        %v479 = vsel %vm477, 1, 0
        %v480 = vsel %vm478, 1, 0
        %v481 = vcvt.s32.f32 %v479
        %v482 = vcvt.s32.f32 %v480
        %v483 = vld [vmem:[%s365] sm:$0xff]
        %v484 = vld [vmem:[%s365 + $0x8] sm:$0xff]
        %485 = vrot.lane.b32.xlu0 %v483, 1
        %v486 = vpop.permute.xlu0 %485
        %487 = vrot.lane.b32.xlu0 %v484, 1
        %v488 = vpop.permute.xlu0 %487
        %vm489 = vcmp.lt.s32.totalorder %v409, 1
        %v490 = vsel %vm489, %v486, %v488
        %v491 = vsel %vm489, %v488, %v486
        %v492 = vmul.f32 %v491, %v463
        %v493 = vmul.f32 %v490, %v464
        %494 = vrot.lane.b32.xlu0 %v483, 127
        %v495 = vpop.permute.xlu0 %494
        %496 = vrot.lane.b32.xlu0 %v484, 127
        %v497 = vpop.permute.xlu0 %496
        %vm498 = vcmp.lt.s32.totalorder %v409, 127
        %v499 = vsel %vm498, %v495, %v497
        %v500 = vsel %vm498, %v497, %v495
        %v501 = vmul.f32 %v499, %v469
        %v502 = vmul.f32 %v500, %v470
        %503 = vrot.lane.b32.xlu0 %v492, 16
        %v504 = vpop.permute.xlu0 %503
        %505 = vrot.lane.b32.xlu0 %v483, 16
        %v506 = vpop.permute.xlu0 %505
        %507 = vrot.lane.b32.xlu0 %v501, 16
        %v508 = vpop.permute.xlu0 %507
        %509 = vrot.lane.b32.xlu0 %v493, 16
        %v510 = vpop.permute.xlu0 %509
        %511 = vrot.lane.b32.xlu0 %v484, 16
        %v512 = vpop.permute.xlu0 %511
        %513 = vrot.lane.b32.xlu0 %v502, 16
        %v514 = vpop.permute.xlu0 %513
        %vm515 = vcmp.lt.s32.totalorder %v409, 16
        %v516 = vsel %vm515, %v504, %v510
        %v517 = vsel %vm515, %v506, %v512
        %v518 = vsel %vm515, %v508, %v514
        %v519 = vsel %vm515, %v510, %v504
        %v520 = vsel %vm515, %v512, %v506
        %v521 = vsel %vm515, %v514, %v508
        %v522 = vmul.f32 %v519, %v475
        %v523 = vmul.f32 %v516, %v476
        %v524 = vmul.f32 %v520, %v475
        %v525 = vmul.f32 %v517, %v476
        %v526 = vmul.f32 %v521, %v475
        %v527 = vmul.f32 %v518, %v476
        %528 = vrot.lane.b32.xlu0 %v492, 112
        %v529 = vpop.permute.xlu0 %528
        %530 = vrot.lane.b32.xlu0 %v483, 112
        %v531 = vpop.permute.xlu0 %530
        %532 = vrot.lane.b32.xlu0 %v501, 112
        %v533 = vpop.permute.xlu0 %532
        %534 = vrot.lane.b32.xlu0 %v493, 112
        %v535 = vpop.permute.xlu0 %534
        %536 = vrot.lane.b32.xlu0 %v484, 112
        %v537 = vpop.permute.xlu0 %536
        %538 = vrot.lane.b32.xlu0 %v502, 112
        %v539 = vpop.permute.xlu0 %538
        %vm540 = vcmp.lt.s32.totalorder %v409, 112
        %v541 = vsel %vm540, %v529, %v535
        %v542 = vsel %vm540, %v531, %v537
        %v543 = vsel %vm540, %v533, %v539
        %v544 = vsel %vm540, %v535, %v529
        %v545 = vsel %vm540, %v537, %v531
        %v546 = vsel %vm540, %v539, %v533
        %v547 = vmul.f32 %v541, %v481
        %v548 = vmul.f32 %v544, %v482
        %v549 = vmul.f32 %v542, %v481
        %v550 = vmul.f32 %v545, %v482
        %v551 = vmul.f32 %v543, %v481
        %v552 = vmul.f32 %v546, %v482
        %v553 = vld [vmem:[%s1] sm:$0xf]
        %v554 = vld [vmem:[%s1 + $0x4] sm:$0xf]
        %v555 = vpack.c.bf16 %v524, %v522
        %v556 = vpack.c.bf16 %v525, %v523
        %v557 = vpack.c.bf16 %v492, %v526
        %v558 = vpack.c.bf16 %v493, %v527
        %v559 = vpack.c.bf16 %v501, %v483
        %v560 = vpack.c.bf16 %v502, %v484
        %v561 = vpack.c.bf16 %v549, %v547
        %v562 = vpack.c.bf16 %v550, %v548
        %v563 = vpack.c.bf16 %v551, %v551
        %v564 = vpack.c.bf16 %v552, %v552
        %v565 = vld [vmem:[%s2] sm:$0xff]
        %v566 = vld [vmem:[%s2 + $0x8] sm:$0xff]
        %568 = vset.pattern.permute.xlu0 0
        %569 = vperm.xlu0 %568, %v565
        %v570 = vpop.permute.xlu0 %569
        %573 = vset.pattern.permute.xlu0 0
        %574 = vperm.xlu0 %573, %v566
        %v575 = vpop.permute.xlu0 %574
        %v579 = vunpack.c.l.b16 %v553
        %v580 = vunpack.c.l.b16 %v554
        %v581 = vpack.c.b16 %v580, %v579
        %vm582 = vcmask 588800
        %v584 = vsel %vm582, %v581, 0
        %vm586 = vcmask 1043456
        %v588 = vsel %vm586, %v563, 0
        %v591 = vsel %vm586, %v564, 0
        %593 = vmatpush.bf16.msra.mxu0 0
        %594 = vmatpush.bf16.msra.mxu0 0
        %595 = vmatpush.bf16.msra.mxu0 0
        %596 = vmatpush.bf16.msra.mxu0 %v588
        %597 = vmatpush.bf16.msra.mxu0 %v561
        %598 = vmatpush.bf16.msra.mxu0 %v559
        %599 = vmatpush.bf16.msra.mxu0 %v557
        %600 = vmatpush.bf16.msra.mxu0 %v555
        %601 = vmatmul.bf16.gmra.mxu0 %v584
        %v602 = vpop.f32.mrf.mxu0
        %v603 = vadd.f32 %v570, %v602
        %v604 = vpop.f32.mrf.mxu0
        %v605 = vadd.f32 %v575, %v604
        %606 = vdwg.mxu0
        %607 = vmatpush.bf16.msra.mxu0 0
        %608 = vmatpush.bf16.msra.mxu0 0
        %609 = vmatpush.bf16.msra.mxu0 0
        %610 = vmatpush.bf16.msra.mxu0 %v591
        %611 = vmatpush.bf16.msra.mxu0 %v562
        %612 = vmatpush.bf16.msra.mxu0 %v560
        %613 = vmatpush.bf16.msra.mxu0 %v558
        %614 = vmatpush.bf16.msra.mxu0 %v556
        %615 = vmatmul.bf16.gmra.mxu0 %v584
        %v616 = vpop.f32.mrf.mxu0
        %v617 = vadd.f32 %v570, %v616
        %v618 = vpop.f32.mrf.mxu0
        %v619 = vadd.f32 %v575, %v618
        %620 = vdwg.mxu0
        %v621 = vmax.f32 %v603, 0.0
        %v622 = vmax.f32 %v617, 0.0
        %v623 = vmax.f32 %v605, 0.0
        %v624 = vmax.f32 %v619, 0.0
        %625 = vrot.lane.b32.xlu0 %v621, 1
        %v626 = vpop.permute.xlu0 %625
        %627 = vrot.lane.b32.xlu0 %v623, 1
        %v628 = vpop.permute.xlu0 %627
        %629 = vrot.lane.b32.xlu0 %v622, 1
        %v630 = vpop.permute.xlu0 %629
        %631 = vrot.lane.b32.xlu0 %v624, 1
        %v632 = vpop.permute.xlu0 %631
        %v633 = vsel %vm489, %v626, %v630
        %v634 = vsel %vm489, %v628, %v632
        %v635 = vsel %vm489, %v630, %v626
        %v636 = vsel %vm489, %v632, %v628
        %v637 = vmul.f32 %v635, %v463
        %v638 = vmul.f32 %v633, %v464
        %v639 = vmul.f32 %v636, %v463
        %v640 = vmul.f32 %v634, %v464
        %641 = vrot.lane.b32.xlu0 %v621, 127
        %v642 = vpop.permute.xlu0 %641
        %643 = vrot.lane.b32.xlu0 %v623, 127
        %v644 = vpop.permute.xlu0 %643
        %645 = vrot.lane.b32.xlu0 %v622, 127
        %v646 = vpop.permute.xlu0 %645
        %647 = vrot.lane.b32.xlu0 %v624, 127
        %v648 = vpop.permute.xlu0 %647
        %v649 = vsel %vm498, %v642, %v646
        %v650 = vsel %vm498, %v644, %v648
        %v651 = vsel %vm498, %v646, %v642
        %v652 = vsel %vm498, %v648, %v644
        %v653 = vmul.f32 %v649, %v469
        %v654 = vmul.f32 %v651, %v470
        %v655 = vmul.f32 %v650, %v469
        %v656 = vmul.f32 %v652, %v470
        %657 = vrot.lane.b32.xlu0 %v637, 16
        %v658 = vpop.permute.xlu0 %657
        %659 = vrot.lane.b32.xlu0 %v639, 16
        %v660 = vpop.permute.xlu0 %659
        %661 = vrot.lane.b32.xlu0 %v621, 16
        %v662 = vpop.permute.xlu0 %661
        %663 = vrot.lane.b32.xlu0 %v623, 16
        %v664 = vpop.permute.xlu0 %663
        %665 = vrot.lane.b32.xlu0 %v653, 16
        %v666 = vpop.permute.xlu0 %665
        %667 = vrot.lane.b32.xlu0 %v655, 16
        %v668 = vpop.permute.xlu0 %667
        %669 = vrot.lane.b32.xlu0 %v638, 16
        %v670 = vpop.permute.xlu0 %669
        %671 = vrot.lane.b32.xlu0 %v640, 16
        %v672 = vpop.permute.xlu0 %671
        %673 = vrot.lane.b32.xlu0 %v622, 16
        %v674 = vpop.permute.xlu0 %673
        %675 = vrot.lane.b32.xlu0 %v624, 16
        %v676 = vpop.permute.xlu0 %675
        %677 = vrot.lane.b32.xlu0 %v654, 16
        %v678 = vpop.permute.xlu0 %677
        %679 = vrot.lane.b32.xlu0 %v656, 16
        %v680 = vpop.permute.xlu0 %679
        %v681 = vsel %vm515, %v658, %v670
        %v682 = vsel %vm515, %v660, %v672
        %v683 = vsel %vm515, %v662, %v674
        %v684 = vsel %vm515, %v664, %v676
        %v685 = vsel %vm515, %v666, %v678
        %v686 = vsel %vm515, %v668, %v680
        %v687 = vsel %vm515, %v670, %v658
        %v688 = vsel %vm515, %v672, %v660
        %v689 = vsel %vm515, %v674, %v662
        %v690 = vsel %vm515, %v676, %v664
        %v691 = vsel %vm515, %v678, %v666
        %v692 = vsel %vm515, %v680, %v668
        %v693 = vmul.f32 %v687, %v475
        %v694 = vmul.f32 %v681, %v476
        %v695 = vmul.f32 %v688, %v475
        %v696 = vmul.f32 %v682, %v476
        %v697 = vmul.f32 %v689, %v475
        %v698 = vmul.f32 %v683, %v476
        %v699 = vmul.f32 %v690, %v475
        %v700 = vmul.f32 %v684, %v476
        %v701 = vmul.f32 %v691, %v475
        %v702 = vmul.f32 %v685, %v476
        %v703 = vmul.f32 %v692, %v475
        %v704 = vmul.f32 %v686, %v476
        %705 = vrot.lane.b32.xlu0 %v637, 112
        %v706 = vpop.permute.xlu0 %705
        %707 = vrot.lane.b32.xlu0 %v639, 112
        %v708 = vpop.permute.xlu0 %707
        %709 = vrot.lane.b32.xlu0 %v621, 112
        %v710 = vpop.permute.xlu0 %709
        %711 = vrot.lane.b32.xlu0 %v623, 112
        %v712 = vpop.permute.xlu0 %711
        %713 = vrot.lane.b32.xlu0 %v653, 112
        %v714 = vpop.permute.xlu0 %713
        %715 = vrot.lane.b32.xlu0 %v655, 112
        %v716 = vpop.permute.xlu0 %715
        %717 = vrot.lane.b32.xlu0 %v638, 112
        %v718 = vpop.permute.xlu0 %717
        %719 = vrot.lane.b32.xlu0 %v640, 112
        %v720 = vpop.permute.xlu0 %719
        %721 = vrot.lane.b32.xlu0 %v622, 112
        %v722 = vpop.permute.xlu0 %721
        %723 = vrot.lane.b32.xlu0 %v624, 112
        %v724 = vpop.permute.xlu0 %723
        %725 = vrot.lane.b32.xlu0 %v654, 112
        %v726 = vpop.permute.xlu0 %725
        %727 = vrot.lane.b32.xlu0 %v656, 112
        %v728 = vpop.permute.xlu0 %727
        %v729 = vsel %vm540, %v706, %v718
        %v730 = vsel %vm540, %v708, %v720
        %v731 = vsel %vm540, %v710, %v722
        %v732 = vsel %vm540, %v712, %v724
        %v733 = vsel %vm540, %v714, %v726
        %v734 = vsel %vm540, %v716, %v728
        %v735 = vsel %vm540, %v718, %v706
        %v736 = vsel %vm540, %v720, %v708
        %v737 = vsel %vm540, %v722, %v710
        %v738 = vsel %vm540, %v724, %v712
        %v739 = vsel %vm540, %v726, %v714
        %v740 = vsel %vm540, %v728, %v716
        %v741 = vmul.f32 %v729, %v481
        %v742 = vmul.f32 %v735, %v482
        %v743 = vmul.f32 %v730, %v481
        %v744 = vmul.f32 %v736, %v482
        %v745 = vmul.f32 %v731, %v481
        %v746 = vmul.f32 %v737, %v482
        %v747 = vmul.f32 %v732, %v481
        %v748 = vmul.f32 %v738, %v482
        %v749 = vmul.f32 %v733, %v481
        %v750 = vmul.f32 %v739, %v482
        %v751 = vmul.f32 %v734, %v481
        %v752 = vmul.f32 %v740, %v482
        %v753 = vld [vmem:[%s3] sm:$0xff]
        %v754 = vpack.c.bf16 %v695, %v693
        %v755 = vpack.c.bf16 %v696, %v694
        %v756 = vpack.c.bf16 %v699, %v697
        %v757 = vpack.c.bf16 %v700, %v698
        %v758 = vpack.c.bf16 %v703, %v701
        %v759 = vpack.c.bf16 %v704, %v702
        %v760 = vpack.c.bf16 %v639, %v637
        %v761 = vpack.c.bf16 %v640, %v638
        %v762 = vpack.c.bf16 %v623, %v621
        %v763 = vpack.c.bf16 %v624, %v622
        %v764 = vpack.c.bf16 %v655, %v653
        %v765 = vpack.c.bf16 %v656, %v654
        %v766 = vpack.c.bf16 %v743, %v741
        %v767 = vpack.c.bf16 %v744, %v742
        %v768 = vpack.c.bf16 %v747, %v745
        %v769 = vpack.c.bf16 %v748, %v746
        %v770 = vpack.c.bf16 %v751, %v749
        %v771 = vpack.c.bf16 %v752, %v750
        %v772 = vld [vmem:[%s4] sm:$0xff]
        %774 = vset.pattern.permute.xlu0 0
        %775 = vperm.xlu0 %774, %v772
        %v776 = vpop.permute.xlu0 %775
        %v779 = vunpack.c.l.b16 %v753
        %v780 = vunpack.c.h.b16 %v753
        %v781 = vpack.c.b16 %v779, %v779
        %v782 = vpack.c.b16 %v780, %v780
        %vm784 = vcmask 130048
        %v786 = vsel %vm784, %v782, 0
        %788 = vmatpush.bf16.msra.mxu0 %v768
        %789 = vmatpush.bf16.msra.mxu0 %v766
        %790 = vmatpush.bf16.msra.mxu0 %v764
        %791 = vmatpush.bf16.msra.mxu0 %v762
        %792 = vmatpush.bf16.msra.mxu0 %v760
        %793 = vmatpush.bf16.msra.mxu0 %v758
        %794 = vmatpush.bf16.msra.mxu0 %v756
        %795 = vmatpush.bf16.msra.mxu0 %v754
        %796 = vmatmul.bf16.gmra.mxu0 %v781
        %v797 = vpop.f32.mrf.mxu0
        %v798 = vadd.f32 %v776, %v797
        %v799 = vpop.f32.mrf.mxu0
        %800 = vdwg.mxu0
        %801 = vmatpush.bf16.msra.mxu0 0
        %802 = vmatpush.bf16.msra.mxu0 0
        %803 = vmatpush.bf16.msra.mxu0 0
        %804 = vmatpush.bf16.msra.mxu0 0
        %805 = vmatpush.bf16.msra.mxu0 0
        %806 = vmatpush.bf16.msra.mxu0 0
        %807 = vmatpush.bf16.msra.mxu0 0
        %808 = vmatpush.bf16.msra.mxu0 %v770
        %809 = vmatmul.bf16.gmra.mxu0 %v786
        %v810 = vpop.f32.mrf.mxu0
        %v811 = vadd.f32 %v798, %v810
        %v812 = vpop.f32.mrf.mxu0
        %813 = vdwg.mxu0
        %814 = vmatpush.bf16.msra.mxu0 %v769
        %815 = vmatpush.bf16.msra.mxu0 %v767
        %816 = vmatpush.bf16.msra.mxu0 %v765
        %817 = vmatpush.bf16.msra.mxu0 %v763
        %818 = vmatpush.bf16.msra.mxu0 %v761
        %819 = vmatpush.bf16.msra.mxu0 %v759
        %820 = vmatpush.bf16.msra.mxu0 %v757
        %821 = vmatpush.bf16.msra.mxu0 %v755
        %822 = vmatmul.bf16.gmra.mxu0 %v781
        %v823 = vpop.f32.mrf.mxu0
        %v824 = vadd.f32 %v776, %v823
        %v825 = vpop.f32.mrf.mxu0
        %826 = vdwg.mxu0
        %827 = vmatpush.bf16.msra.mxu0 0
        %828 = vmatpush.bf16.msra.mxu0 0
        %829 = vmatpush.bf16.msra.mxu0 0
        %830 = vmatpush.bf16.msra.mxu0 0
        %831 = vmatpush.bf16.msra.mxu0 0
        %832 = vmatpush.bf16.msra.mxu0 0
        %833 = vmatpush.bf16.msra.mxu0 0
        %834 = vmatpush.bf16.msra.mxu0 %v771
        %835 = vmatmul.bf16.gmra.mxu0 %v786
        %v836 = vpop.f32.mrf.mxu0
        %v837 = vadd.f32 %v824, %v836
        %v838 = vpop.f32.mrf.mxu0
        %839 = vdwg.mxu0
        %v840 = vmax.f32 %v811, 0.0
        %v841 = vmax.f32 %v837, 0.0
        %842 = vrot.lane.b32.xlu0 %v840, 1
        %v843 = vpop.permute.xlu0 %842
        %844 = vrot.lane.b32.xlu0 %v841, 1
        %v845 = vpop.permute.xlu0 %844
        %v846 = vsel %vm489, %v843, %v845
        %v847 = vsel %vm489, %v845, %v843
        %v848 = vmul.f32 %v847, %v463
        %v849 = vmul.f32 %v846, %v464
        %850 = vrot.lane.b32.xlu0 %v840, 127
        %v851 = vpop.permute.xlu0 %850
        %852 = vrot.lane.b32.xlu0 %v841, 127
        %v853 = vpop.permute.xlu0 %852
        %v854 = vsel %vm498, %v851, %v853
        %v855 = vsel %vm498, %v853, %v851
        %v856 = vmul.f32 %v854, %v469
        %v857 = vmul.f32 %v855, %v470
        %858 = vrot.lane.b32.xlu0 %v848, 16
        %v859 = vpop.permute.xlu0 %858
        %860 = vrot.lane.b32.xlu0 %v840, 16
        %v861 = vpop.permute.xlu0 %860
        %862 = vrot.lane.b32.xlu0 %v856, 16
        %v863 = vpop.permute.xlu0 %862
        %864 = vrot.lane.b32.xlu0 %v849, 16
        %v865 = vpop.permute.xlu0 %864
        %866 = vrot.lane.b32.xlu0 %v841, 16
        %v867 = vpop.permute.xlu0 %866
        %868 = vrot.lane.b32.xlu0 %v857, 16
        %v869 = vpop.permute.xlu0 %868
        %v870 = vsel %vm515, %v859, %v865
        %v871 = vsel %vm515, %v861, %v867
        %v872 = vsel %vm515, %v863, %v869
        %v873 = vsel %vm515, %v865, %v859
        %v874 = vsel %vm515, %v867, %v861
        %v875 = vsel %vm515, %v869, %v863
        %v876 = vmul.f32 %v873, %v475
        %v877 = vmul.f32 %v870, %v476
        %v878 = vmul.f32 %v874, %v475
        %v879 = vmul.f32 %v871, %v476
        %v880 = vmul.f32 %v875, %v475
        %v881 = vmul.f32 %v872, %v476
        %882 = vrot.lane.b32.xlu0 %v848, 112
        %v883 = vpop.permute.xlu0 %882
        %884 = vrot.lane.b32.xlu0 %v840, 112
        %v885 = vpop.permute.xlu0 %884
        %886 = vrot.lane.b32.xlu0 %v856, 112
        %v887 = vpop.permute.xlu0 %886
        %888 = vrot.lane.b32.xlu0 %v849, 112
        %v889 = vpop.permute.xlu0 %888
        %890 = vrot.lane.b32.xlu0 %v841, 112
        %v891 = vpop.permute.xlu0 %890
        %892 = vrot.lane.b32.xlu0 %v857, 112
        %v893 = vpop.permute.xlu0 %892
        %v894 = vsel %vm540, %v883, %v889
        %v895 = vsel %vm540, %v885, %v891
        %v896 = vsel %vm540, %v887, %v893
        %v897 = vsel %vm540, %v889, %v883
        %v898 = vsel %vm540, %v891, %v885
        %v899 = vsel %vm540, %v893, %v887
        %v900 = vmul.f32 %v894, %v481
        %v901 = vmul.f32 %v897, %v482
        %v902 = vmul.f32 %v895, %v481
        %v903 = vmul.f32 %v898, %v482
        %v904 = vmul.f32 %v896, %v481
        %v905 = vmul.f32 %v899, %v482
        %v906 = vld [vmem:[%s5] sm:$0xf]
        %v907 = vpack.c.bf16 %v878, %v876
        %v908 = vpack.c.bf16 %v879, %v877
        %v909 = vpack.c.bf16 %v848, %v880
        %v910 = vpack.c.bf16 %v849, %v881
        %v911 = vpack.c.bf16 %v856, %v840
        %v912 = vpack.c.bf16 %v857, %v841
        %v913 = vpack.c.bf16 %v902, %v900
        %v914 = vpack.c.bf16 %v903, %v901
        %v915 = vpack.c.bf16 %v904, %v904
        %v916 = vpack.c.bf16 %v905, %v905
        %v917 = vld [vmem:[%s6] sm:$0xff]
        %919 = vset.pattern.permute.xlu0 0
        %920 = vperm.xlu0 %919, %v917
        %v921 = vpop.permute.xlu0 %920
        %v924 = vsel %vm582, %v906, 0
        %v927 = vsel %vm586, %v915, 0
        %v930 = vsel %vm586, %v916, 0
        %932 = vmatpush.bf16.msra.mxu0 0
        %933 = vmatpush.bf16.msra.mxu0 0
        %934 = vmatpush.bf16.msra.mxu0 0
        %935 = vmatpush.bf16.msra.mxu0 %v927
        %936 = vmatpush.bf16.msra.mxu0 %v913
        %937 = vmatpush.bf16.msra.mxu0 %v911
        %938 = vmatpush.bf16.msra.mxu0 %v909
        %939 = vmatpush.bf16.msra.mxu0 %v907
        %940 = vmatmul.bf16.gmra.mxu0 %v924
        %v941 = vpop.f32.mrf.mxu0
        %v942 = vadd.f32 %v921, %v941
        %v943 = vpop.f32.mrf.mxu0
        %944 = vdwg.mxu0
        %945 = vmatpush.bf16.msra.mxu0 0
        %946 = vmatpush.bf16.msra.mxu0 0
        %947 = vmatpush.bf16.msra.mxu0 0
        %948 = vmatpush.bf16.msra.mxu0 %v930
        %949 = vmatpush.bf16.msra.mxu0 %v914
        %950 = vmatpush.bf16.msra.mxu0 %v912
        %951 = vmatpush.bf16.msra.mxu0 %v910
        %952 = vmatpush.bf16.msra.mxu0 %v908
        %953 = vmatmul.bf16.gmra.mxu0 %v924
        %v954 = vpop.f32.mrf.mxu0
        %v955 = vadd.f32 %v921, %v954
        %v956 = vpop.f32.mrf.mxu0
        %957 = vdwg.mxu0
        %v958 = vmax.f32 %v942, 0.0
        %v959 = vmax.f32 %v955, 0.0
        %960 = vrot.lane.b32.xlu0 %v958, 1
        %v961 = vpop.permute.xlu0 %960
        %962 = vrot.lane.b32.xlu0 %v959, 1
        %v963 = vpop.permute.xlu0 %962
        %v964 = vsel %vm489, %v961, %v963
        %v965 = vsel %vm489, %v963, %v961
        %v966 = vmul.f32 %v965, %v463
        %v967 = vmul.f32 %v964, %v464
        %968 = vrot.lane.b32.xlu0 %v958, 127
        %v969 = vpop.permute.xlu0 %968
        %970 = vrot.lane.b32.xlu0 %v959, 127
        %v971 = vpop.permute.xlu0 %970
        %v972 = vsel %vm498, %v969, %v971
        %v973 = vsel %vm498, %v971, %v969
        %v974 = vmul.f32 %v972, %v469
        %v975 = vmul.f32 %v973, %v470
        %976 = vrot.lane.b32.xlu0 %v966, 16
        %v977 = vpop.permute.xlu0 %976
        %978 = vrot.lane.b32.xlu0 %v958, 16
        %v979 = vpop.permute.xlu0 %978
        %980 = vrot.lane.b32.xlu0 %v974, 16
        %v981 = vpop.permute.xlu0 %980
        %982 = vrot.lane.b32.xlu0 %v967, 16
        %v983 = vpop.permute.xlu0 %982
        %984 = vrot.lane.b32.xlu0 %v959, 16
        %v985 = vpop.permute.xlu0 %984
        %986 = vrot.lane.b32.xlu0 %v975, 16
        %v987 = vpop.permute.xlu0 %986
        %v988 = vsel %vm515, %v977, %v983
        %v989 = vsel %vm515, %v979, %v985
        %v990 = vsel %vm515, %v981, %v987
        %v991 = vsel %vm515, %v983, %v977
        %v992 = vsel %vm515, %v985, %v979
        %v993 = vsel %vm515, %v987, %v981
        %v994 = vmul.f32 %v991, %v475
        %v995 = vmul.f32 %v988, %v476
        %v996 = vmul.f32 %v992, %v475
        %v997 = vmul.f32 %v989, %v476
        %v998 = vmul.f32 %v993, %v475
        %v999 = vmul.f32 %v990, %v476
        %1000 = vrot.lane.b32.xlu0 %v966, 112
        %v1001 = vpop.permute.xlu0 %1000
        %1002 = vrot.lane.b32.xlu0 %v958, 112
        %v1003 = vpop.permute.xlu0 %1002
        %1004 = vrot.lane.b32.xlu0 %v974, 112
        %v1005 = vpop.permute.xlu0 %1004
        %1006 = vrot.lane.b32.xlu0 %v967, 112
        %v1007 = vpop.permute.xlu0 %1006
        %1008 = vrot.lane.b32.xlu0 %v959, 112
        %v1009 = vpop.permute.xlu0 %1008
        %1010 = vrot.lane.b32.xlu0 %v975, 112
        %v1011 = vpop.permute.xlu0 %1010
        %v1012 = vsel %vm540, %v1001, %v1007
        %v1013 = vsel %vm540, %v1003, %v1009
        %v1014 = vsel %vm540, %v1005, %v1011
        %v1015 = vsel %vm540, %v1007, %v1001
        %v1016 = vsel %vm540, %v1009, %v1003
        %v1017 = vsel %vm540, %v1011, %v1005
        %v1018 = vmul.f32 %v1012, %v481
        %v1019 = vmul.f32 %v1015, %v482
        %v1020 = vmul.f32 %v1013, %v481
        %v1021 = vmul.f32 %v1016, %v482
        %v1022 = vmul.f32 %v1014, %v481
        %v1023 = vmul.f32 %v1017, %v482
        %v1024 = vld [vmem:[%s7] sm:$0xf]
        %v1025 = vpack.c.bf16 %v996, %v994
        %v1026 = vpack.c.bf16 %v997, %v995
        %v1027 = vpack.c.bf16 %v966, %v998
        %v1028 = vpack.c.bf16 %v967, %v999
        %v1029 = vpack.c.bf16 %v974, %v958
        %v1030 = vpack.c.bf16 %v975, %v959
        %v1031 = vpack.c.bf16 %v1020, %v1018
        %v1032 = vpack.c.bf16 %v1021, %v1019
        %v1033 = vpack.c.bf16 %v1022, %v1022
        %v1034 = vpack.c.bf16 %v1023, %v1023
        %v1035 = vld [vmem:[%s8] sm:$0xff]
        %1037 = vset.pattern.permute.xlu0 0
        %1038 = vperm.xlu0 %1037, %v1035
        %v1039 = vpop.permute.xlu0 %1038
        %v1042 = vsel %vm582, %v1024, 0
        %v1045 = vsel %vm586, %v1033, 0
        %v1048 = vsel %vm586, %v1034, 0
        %1050 = vmatpush.bf16.msra.mxu0 0
        %1051 = vmatpush.bf16.msra.mxu0 0
        %1052 = vmatpush.bf16.msra.mxu0 0
        %1053 = vmatpush.bf16.msra.mxu0 %v1045
        %1054 = vmatpush.bf16.msra.mxu0 %v1031
        %1055 = vmatpush.bf16.msra.mxu0 %v1029
        %1056 = vmatpush.bf16.msra.mxu0 %v1027
        %1057 = vmatpush.bf16.msra.mxu0 %v1025
        %1058 = vmatmul.bf16.gmra.mxu0 %v1042
        %v1059 = vpop.f32.mrf.mxu0
        %v1060 = vadd.f32 %v1039, %v1059
        %v1061 = vpop.f32.mrf.mxu0
        %1062 = vdwg.mxu0
        %1063 = vmatpush.bf16.msra.mxu0 0
        %1064 = vmatpush.bf16.msra.mxu0 0
        %1065 = vmatpush.bf16.msra.mxu0 0
        %1066 = vmatpush.bf16.msra.mxu0 %v1048
        %1067 = vmatpush.bf16.msra.mxu0 %v1032
        %1068 = vmatpush.bf16.msra.mxu0 %v1030
        %1069 = vmatpush.bf16.msra.mxu0 %v1028
        %1070 = vmatpush.bf16.msra.mxu0 %v1026
        %1071 = vmatmul.bf16.gmra.mxu0 %v1042
        %v1072 = vpop.f32.mrf.mxu0
        %v1073 = vadd.f32 %v1039, %v1072
        %v1074 = vpop.f32.mrf.mxu0
        %1075 = vdwg.mxu0
        %v1076 = vmax.f32 %v1060, 0.0
        %v1077 = vmax.f32 %v1073, 0.0
        %v1078 = vld [vmem:[%s9] sm:$0xf]
        %1080 = vset.pattern.permute.xlu0 0
        %1081 = vperm.xlu0 %1080, %v1078
        %v1082 = vpop.permute.xlu0 %1081
        %v1084 = vperm.slane %v1076, 0
        %v1085 = vperm.slane %v1077, 0
        %v1086 = vmul.f32 %v1082, %v1084
        %v1087 = vmul.f32 %v1082, %v1085
        %v1088 = vadd.f32 %v1086, 0.0
        %v1089 = vadd.f32 %v1087, 0.0
        %1090 = vset.pattern.permute.xlu0 1
        %1091 = vperm.xlu0 %1090, %v1078
        %v1092 = vpop.permute.xlu0 %1091
        %v1094 = vperm.slane %v1076, 1
        %v1095 = vperm.slane %v1077, 1
        %v1096 = vmul.f32 %v1092, %v1094
        %v1097 = vmul.f32 %v1092, %v1095
        %v1098 = vadd.f32 %v1088, %v1096
        %v1099 = vadd.f32 %v1089, %v1097
        %v1100 = vld [vmem:[%s10] sm:$0xf]
        %1102 = vset.pattern.permute.xlu0 0
        %1103 = vperm.xlu0 %1102, %v1100
        %v1104 = vpop.permute.xlu0 %1103
        %v1106 = vadd.f32 %v1098, %v1104
        %v1107 = vadd.f32 %v1099, %v1104
        %v1110 = vrot.slane %v1107, 4
        %v1111 = vsel %vm586, %v1106, %v1110
        %1113 = vst [vmem:[%s404] sm:$0xff] %v1111
        %s1114 = sand.u32 %s272, 1
        %s1115 = scalar_lea.sflag [#allocation4], %s1114
        %s1116 = sand.u32 %s272, 1
        %s1117 = smul.addr %s1116, 8
        %s1118 = scalar_lea.vmem [#allocation5], %s1117
        // Predicated region
        $region69: #{tpu_custom_call.1} parent=63 // pred_check
          %p1119 = pneg %p282
        $region70: #{tpu_custom_call.1} parent=63 // pred_check_branch
          %1121 = sbr.rel (%p1119) target = $region72
        $region71: #{tpu_custom_call.1} parent=63 // pred_region
          %s1122 = smul.u32 2, %s28
          %1124 = vsyncadd %s1115, 0
          %s1125 = smul.addr %s1122, 4
          %s1126 = scalar_lea.hbm %s11, %s1125
          %s1128 = sshll.u32 %s1118, 4
          %s1129 = int_to_ptr.vmem [resolvable:$true] %s1128
          %s1130 = sshll.u32 %s1126, 4
          %s1131 = int_to_ptr.hbm [resolvable:$true] %s1130
          %1133 = dma.vmem_to_hbm [thread:$0]  %s1129, 128, %s1131, %s1115
        $region72: #{tpu_custom_call.1} parent=63 // pred_fallthru
          _
      $region64: #{tpu_custom_call.1} parent=5 // pred_fallthru
        _
      %p1134 = scmp.le.s32.totalorder 2, %s23
      // Predicated region
      $region73: #{tpu_custom_call.1} parent=5 // pred_check
        %p1135 = pneg %p1134
      $region74: #{tpu_custom_call.1} parent=5 // pred_check_branch
        %1137 = sbr.rel (%p1135) target = $region76
      $region75: #{tpu_custom_call.1} parent=5 // pred_region
        %s1138 = ssub.s32 %s23, 2
        // Predicated region
        $region77: #{tpu_custom_call.1} parent=75 // pred_check
          %p1139 = pneg %p288
        $region78: #{tpu_custom_call.1} parent=75 // pred_check_branch
          %1141 = sbr.rel (%p1139) target = $region80
        $region79: #{tpu_custom_call.1} parent=75 // pred_region
          %s1142 = sand.u32 %s273, 1
          %s1143 = scalar_lea.sflag [#allocation4], %s1142
          %s1144 = sand.u32 %s273, 1
          %s1145 = smul.addr %s1144, 8
          %s1146 = scalar_lea.vmem [#allocation5], %s1145
          %1148 = dma.done %s1143, 128
        $region80: #{tpu_custom_call.1} parent=75 // pred_fallthru
          _
      $region76: #{tpu_custom_call.1} parent=5 // pred_fallthru
        _
    $region6: #{tpu_custom_call.1} parent=1 // loop_footer
      %s27 = sadd.s32 1, %s23
    $region7: #{tpu_custom_call.1} parent=1 // loop_footer_branch
      %22 = sbr.rel target = $region3
    $region8: #{tpu_custom_call.1} parent=1 // loop_exit
      _
    %1149 = vsyncpa [#allocation3], 1
    %s1150 = scalar_lea.sflag [#allocation3], 1
    %1151 = vsyncpa %s1150, 1
    %1152 = vsyncpa [#allocation4], 1
    %s1153 = scalar_lea.sflag [#allocation4], 1
    %1154 = vsyncpa %s1153, 1

</llo_original>
